<compile_context>
chip_gen: v7x
topology: tpu7x:2x2x1
jax: 0.10.0
libtpu: 0.0.40
codegen_flags: <defaults>
</compile_context>

<pallas_src>
import functools

import numpy as np
import jax
import jax.numpy as jnp
from jax.experimental import pallas as pl
from jax.experimental.pallas import tpu as pltpu


# ----------------------------------------------------------------------------
# Constant 1-D x2 interpolation matrix (align_corners=False, half-pixel
# centres, edge clamp).  For scale 2 its rows are exactly {0.75, 0.25}
# (and 1.0 at the clamped edges), so (M @ v) == torch trilinear per axis.
# ----------------------------------------------------------------------------
def _interp_matrix_up2(n):
    m = np.zeros((2 * n, n), dtype=np.float64)
    for j in range(2 * n):
        src = max((j + 0.5) / 2.0 - 0.5, 0.0)
        i0 = int(np.floor(src))
        lam = src - i0
        i1 = min(i0 + 1, n - 1)
        m[j, i0] += 1.0 - lam
        m[j, i1] += lam
    return m.astype(np.float32)


# ----------------------------------------------------------------------------
# Kernel: one (1, bd, H, W) input block (+ clamped prev/next halo planes)
# -> one (1, scale_d*bd, 2H, 2W) output block, streamed plane by plane.
# ----------------------------------------------------------------------------
def _upsample_kernel(x_ref, xprev_ref, xnext_ref, uh_ref, uw_ref, o_ref, *,
                     scale_d, bd):
    # Compute in f32 on all generations (v5e has no bf16 VPU; intermediates
    # are only a few planes, so the f32 footprint is negligible).
    uh = uh_ref[...]            # (2H, H)  f32
    uw = uw_ref[...]            # (W, 2W)  f32

    def up_hw(plane):           # (H, W) f32 -> (2H, 2W) f32 via two MXU matmuls
        t = jnp.dot(uh, plane, preferred_element_type=jnp.float32)
        return jnp.dot(t, uw, preferred_element_type=jnp.float32)

    if scale_d == 2:
        # out[2i]   = 0.75*x[i] + 0.25*x[clamp(i-1)]
        # out[2i+1] = 0.75*x[i] + 0.25*x[clamp(i+1)]
        for i in range(bd):     # bd is static -> fully unrolled, static slices
            cur = x_ref[0, i].astype(jnp.float32)
            prev = (xprev_ref[0, 0] if i == 0 else x_ref[0, i - 1]).astype(jnp.float32)
            nxt = (xnext_ref[0, 0] if i == bd - 1 else x_ref[0, i + 1]).astype(jnp.float32)
            even = cur + 0.25 * (prev - cur)
            odd = cur + 0.25 * (nxt - cur)
            o_ref[0, 2 * i] = up_hw(even).astype(o_ref.dtype)
            o_ref[0, 2 * i + 1] = up_hw(odd).astype(o_ref.dtype)
    else:
        for i in range(bd):
            o_ref[0, i] = up_hw(x_ref[0, i].astype(jnp.float32)).astype(o_ref.dtype)


# ----------------------------------------------------------------------------
# Per-generation VMEM budgeting and D-tile selection.
# ----------------------------------------------------------------------------
def _vmem_budget_bytes():
    try:
        cap = int(pltpu.get_tpu_info().vmem_capacity_bytes)
    except Exception:
        cap = 64 * 1024 * 1024          # conservative (v7x-sized) fallback
    # Blocks get ~55% of physical VMEM (v7x: ~35 MiB; v5e/v6e: ~70 MiB);
    # the scoped limit is raised to ~85% so double-buffering has headroom.
    return int(cap * 0.55), int(cap * 0.85)


def _choose_d_tile(nc, d, h, w, scale_d, itemsize, budget_bytes):
    """Largest divisor of d whose double-buffered in+out blocks fit the budget,
    preferring one that still yields >= 4 total grid steps (v7x megacore)."""
    def step_bytes(bd):
        in_blk = bd * h * w * itemsize                      # main input block
        halo = 2 * h * w * itemsize                         # prev/next planes
        out_blk = scale_d * bd * (2 * h) * (2 * w) * itemsize
        mats = (2 * h * h + 2 * w * w) * 4                  # Uh, Uw (f32)
        temps = 8 * (2 * h) * (2 * w) * 4                   # streamed f32 planes
        return 2 * (in_blk + halo + out_blk) + mats + temps

    divisors = [k for k in range(d, 0, -1) if d % k == 0]
    fitting = [k for k in divisors if step_bytes(k) <= budget_bytes]
    if not fitting:
        # TODO(synk): also tile H (with a 1-row halo) if a single plane pair
        # ever exceeds the VMEM budget.
        return 1
    for k in fitting:                   # largest first
        if nc * (d // k) >= 4:
            return k
    return fitting[-1]


# ----------------------------------------------------------------------------
# Wrapper: forward of AdaptiveInterpolationUpsample.
# ----------------------------------------------------------------------------
def adaptive_interpolation_upsample(x, aniso_d, num_downsamples, *, d_tile=None):
    """x: (N, C, D, H, W).  Returns (y, num_downsamples - 1) with H and W
    doubled and D doubled iff num_downsamples - aniso_d > 0 (SpatialTensor's
    can_upsample_d), matching nnf.interpolate(mode='trilinear')."""
    n, c, d, h, w = map(int, x.shape)
    can_upsample_d = max(num_downsamples - aniso_d, 0) > 0
    scale_d = 2 if can_upsample_d else 1
    d_out, h_out, w_out = d * scale_d, 2 * h, 2 * w
    nc = n * c

    x4 = x.reshape(nc, d, h, w)                     # free reshape, no transpose

    uh = jnp.asarray(_interp_matrix_up2(h))         # (2H, H)
    uw = jnp.asarray(_interp_matrix_up2(w).T)       # (W, 2W)

    block_budget, vmem_limit = _vmem_budget_bytes()
    if d_tile is None:
        bd = _choose_d_tile(nc, d, h, w, scale_d, x.dtype.itemsize, block_budget)
    else:
        assert d % d_tile == 0
        bd = d_tile
    n_t = d // bd

    kernel = functools.partial(_upsample_kernel, scale_d=scale_d, bd=bd)

    main_map = lambda i, t: (i, t, 0, 0)
    prev_map = lambda i, t: (i, jnp.maximum(t * bd - 1, 0), 0, 0)
    next_map = lambda i, t: (i, jnp.minimum(t * bd + bd, d - 1), 0, 0)
    const_map = lambda i, t: (0, 0)

    # The main input is only ~1/9 of HBM traffic and already double-buffered,
    # so the optional pipeline_mode=pl.Buffered(3) depth is left at default.
    in_specs = [
        pl.BlockSpec((1, bd, h, w), main_map),
        pl.BlockSpec((1, 1, h, w), prev_map),
        pl.BlockSpec((1, 1, h, w), next_map),
        pl.BlockSpec((2 * h, h), const_map),
        pl.BlockSpec((w, 2 * w), const_map),
    ]
    out_specs = pl.BlockSpec((1, scale_d * bd, h_out, w_out), main_map)

    y4 = pl.pallas_call(
        kernel,
        out_shape=jax.ShapeDtypeStruct((nc, d_out, h_out, w_out), x.dtype),
        grid_spec=pltpu.PrefetchScalarGridSpec(
            num_scalar_prefetch=0,
            grid=(nc, n_t),
            in_specs=in_specs,
            out_specs=out_specs),
        compiler_params=pltpu.CompilerParams(
            dimension_semantics=("parallel", "parallel"),
            vmem_limit_bytes=vmem_limit),
    )(x4, x4, x4, uh, uw)

    y = y4.reshape(n, c, d_out, h_out, w_out)       # free reshape back
    return y, num_downsamples - 1


# ----------------------------------------------------------------------------
# Pure-JAX reference (gather + lerp) for correctness checking.
# ----------------------------------------------------------------------------
def _upsample_axis_ref(x, axis, scale):
    if scale == 1:
        return x
    n = x.shape[axis]
    j = np.arange(2 * n)
    src = np.maximum((j + 0.5) / 2.0 - 0.5, 0.0)
    i0 = np.floor(src).astype(np.int32)
    lam = (src - i0).astype(np.float32)
    i1 = np.minimum(i0 + 1, n - 1)
    x0 = jnp.take(x, jnp.asarray(i0), axis=axis)
    x1 = jnp.take(x, jnp.asarray(i1), axis=axis)
    shape = [1] * x.ndim
    shape[axis] = 2 * n
    lam = jnp.asarray(lam).reshape(shape)
    return x0 * (1.0 - lam) + x1 * lam


def reference_upsample(x, aniso_d, num_downsamples):
    scale_d = 2 if max(num_downsamples - aniso_d, 0) > 0 else 1
    y = _upsample_axis_ref(x, 2, scale_d)
    y = _upsample_axis_ref(y, 3, 2)
    y = _upsample_axis_ref(y, 4, 2)
    return y


if __name__ == "__main__":
    key = jax.random.PRNGKey(0)
    N, C, D, H, W = 2, 4, 4, 8, 8
    x = jax.random.normal(key, (N, C, D, H, W), dtype=jnp.float32)

    # Case 1: depth can still be upsampled -> scale (2, 2, 2).
    y, nd = adaptive_interpolation_upsample(x, aniso_d=0, num_downsamples=1)
    y = jax.block_until_ready(y)
    assert y.shape == (N, C, 2 * D, 2 * H, 2 * W), y.shape
    assert nd == 0
    y_ref = np.asarray(reference_upsample(x, 0, 1))
    np.testing.assert_allclose(np.asarray(y), y_ref, rtol=1e-5, atol=1e-5)

    # Case 2: anisotropic depth still pending -> scale (1, 2, 2).
    y2, _ = adaptive_interpolation_upsample(x, aniso_d=2, num_downsamples=1)
    y2 = jax.block_until_ready(y2)
    assert y2.shape == (N, C, D, 2 * H, 2 * W), y2.shape
    np.testing.assert_allclose(np.asarray(y2),
                               np.asarray(reference_upsample(x, 2, 1)),
                               rtol=1e-5, atol=1e-5)

    # Case 3: force depth tiling (exercises the clamped halo index_maps).
    y3, _ = adaptive_interpolation_upsample(x, aniso_d=0, num_downsamples=1,
                                            d_tile=2)
    y3 = jax.block_until_ready(y3)
    np.testing.assert_allclose(np.asarray(y3), y_ref, rtol=1e-5, atol=1e-5)

    print("KERNEL_OK")
</pallas_src>

<mosaic_0001>
module attributes {stable_mosaic.version = 11 : i64} {
  func.func @_upsample_kernel(%arg0: i32, %arg1: i32, %arg2: memref<1x4x8x8xf32, #tpu.memory_space<vmem>>, %arg3: memref<1x1x8x8xf32, #tpu.memory_space<vmem>>, %arg4: memref<1x1x8x8xf32, #tpu.memory_space<vmem>>, %arg5: memref<16x8xf32, #tpu.memory_space<vmem>>, %arg6: memref<8x16xf32, #tpu.memory_space<vmem>>, %arg7: memref<1x8x16x16xf32, #tpu.memory_space<vmem>>) attributes {dimension_semantics = [#tpu.dimension_semantics<parallel>, #tpu.dimension_semantics<parallel>], iteration_bounds = array<i64: 8, 1>, scalar_prefetch = 0 : i64, scratch_operands = 0 : i64, tpu.core_type = #tpu.core_type<tc>, window_params = [{transform_indices = @transform_0, window_bounds = array<i64: 1, 4, 8, 8>}, {transform_indices = @transform_1, window_bounds = array<i64: 1, 1, 8, 8>}, {transform_indices = @transform_2, window_bounds = array<i64: 1, 1, 8, 8>}, {pipeline_mode = #tpu.pipeline_mode<synchronous>, transform_indices = @transform_3, window_bounds = array<i64: 16, 8>}, {pipeline_mode = #tpu.pipeline_mode<synchronous>, transform_indices = @transform_4, window_bounds = array<i64: 8, 16>}, {transform_indices = @transform_5, window_bounds = array<i64: 1, 8, 16, 16>}]} {
    %c0 = arith.constant 0 : index
    %c0_0 = arith.constant 0 : index
    %0 = vector.load %arg5[%c0, %c0_0] : memref<16x8xf32, #tpu.memory_space<vmem>>, vector<16x8xf32>
    %c0_1 = arith.constant 0 : index
    %c0_2 = arith.constant 0 : index
    %1 = vector.load %arg6[%c0_1, %c0_2] : memref<8x16xf32, #tpu.memory_space<vmem>>, vector<8x16xf32>
    %c0_3 = arith.constant 0 : index
    %c0_4 = arith.constant 0 : index
    %c0_5 = arith.constant 0 : index
    %c0_6 = arith.constant 0 : index
    %2 = vector.load %arg2[%c0_3, %c0_4, %c0_5, %c0_6] : memref<1x4x8x8xf32, #tpu.memory_space<vmem>>, vector<1x1x8x8xf32>
    %3 = vector.shape_cast %2 : vector<1x1x8x8xf32> to vector<8x8xf32>
    %c0_7 = arith.constant 0 : index
    %c0_8 = arith.constant 0 : index
    %c0_9 = arith.constant 0 : index
    %c0_10 = arith.constant 0 : index
    %4 = vector.load %arg3[%c0_7, %c0_8, %c0_9, %c0_10] : memref<1x1x8x8xf32, #tpu.memory_space<vmem>>, vector<1x1x8x8xf32>
    %5 = vector.shape_cast %4 : vector<1x1x8x8xf32> to vector<8x8xf32>
    %c0_11 = arith.constant 0 : index
    %c1 = arith.constant 1 : index
    %c0_12 = arith.constant 0 : index
    %c0_13 = arith.constant 0 : index
    %6 = vector.load %arg2[%c0_11, %c1, %c0_12, %c0_13] : memref<1x4x8x8xf32, #tpu.memory_space<vmem>>, vector<1x1x8x8xf32>
    %7 = vector.shape_cast %6 : vector<1x1x8x8xf32> to vector<8x8xf32>
    %8 = arith.subf %5, %3 : vector<8x8xf32>
    %cst = arith.constant 2.500000e-01 : f32
    %9 = vector.broadcast %cst : f32 to vector<8x8xf32>
    %10 = arith.mulf %9, %8 : vector<8x8xf32>
    %11 = arith.addf %3, %10 : vector<8x8xf32>
    %12 = arith.subf %7, %3 : vector<8x8xf32>
    %cst_14 = arith.constant 2.500000e-01 : f32
    %13 = vector.broadcast %cst_14 : f32 to vector<8x8xf32>
    %14 = arith.mulf %13, %12 : vector<8x8xf32>
    %15 = arith.addf %3, %14 : vector<8x8xf32>
    %cst_15 = arith.constant dense<0.000000e+00> : vector<16x8xf32>
    %16 = tpu.matmul %0, %11, %cst_15 {dimension_numbers = #tpu.dot_dimension_numbers<[1], [0], [0], [1], [0, 0, 1, 1], [], []>} : vector<16x8xf32>, vector<8x8xf32>, vector<16x8xf32> -> vector<16x8xf32>
    %cst_16 = arith.constant dense<0.000000e+00> : vector<16x16xf32>
    %17 = tpu.matmul %16, %1, %cst_16 {dimension_numbers = #tpu.dot_dimension_numbers<[1], [0], [0], [1], [0, 0, 1, 1], [], []>} : vector<16x8xf32>, vector<8x16xf32>, vector<16x16xf32> -> vector<16x16xf32>
    %c0_17 = arith.constant 0 : index
    %c0_18 = arith.constant 0 : index
    %c0_19 = arith.constant 0 : index
    %c0_20 = arith.constant 0 : index
    %18 = vector.load %arg7[%c0_17, %c0_18, %c0_19, %c0_20] : memref<1x8x16x16xf32, #tpu.memory_space<vmem>>, vector<1x1x16x16xf32>
    %19 = vector.shape_cast %18 : vector<1x1x16x16xf32> to vector<16x16xf32>
    %20 = vector.shape_cast %17 : vector<16x16xf32> to vector<1x1x16x16xf32>
    tpu.vector_store %arg7[%c0_17, %c0_18, %c0_19, %c0_20], %20 {strides = array<i32>} : memref<1x8x16x16xf32, #tpu.memory_space<vmem>>, vector<1x1x16x16xf32>,
    %cst_21 = arith.constant dense<0.000000e+00> : vector<16x8xf32>
    %21 = tpu.matmul %0, %15, %cst_21 {dimension_numbers = #tpu.dot_dimension_numbers<[1], [0], [0], [1], [0, 0, 1, 1], [], []>} : vector<16x8xf32>, vector<8x8xf32>, vector<16x8xf32> -> vector<16x8xf32>
    %cst_22 = arith.constant dense<0.000000e+00> : vector<16x16xf32>
    %22 = tpu.matmul %21, %1, %cst_22 {dimension_numbers = #tpu.dot_dimension_numbers<[1], [0], [0], [1], [0, 0, 1, 1], [], []>} : vector<16x8xf32>, vector<8x16xf32>, vector<16x16xf32> -> vector<16x16xf32>
    %c0_23 = arith.constant 0 : index
    %c1_24 = arith.constant 1 : index
    %c0_25 = arith.constant 0 : index
    %c0_26 = arith.constant 0 : index
    %23 = vector.load %arg7[%c0_23, %c1_24, %c0_25, %c0_26] : memref<1x8x16x16xf32, #tpu.memory_space<vmem>>, vector<1x1x16x16xf32>
    %24 = vector.shape_cast %23 : vector<1x1x16x16xf32> to vector<16x16xf32>
    %25 = vector.shape_cast %22 : vector<16x16xf32> to vector<1x1x16x16xf32>
    tpu.vector_store %arg7[%c0_23, %c1_24, %c0_25, %c0_26], %25 {strides = array<i32>} : memref<1x8x16x16xf32, #tpu.memory_space<vmem>>, vector<1x1x16x16xf32>,
    %c0_27 = arith.constant 0 : index
    %c1_28 = arith.constant 1 : index
    %c0_29 = arith.constant 0 : index
    %c0_30 = arith.constant 0 : index
    %26 = vector.load %arg2[%c0_27, %c1_28, %c0_29, %c0_30] : memref<1x4x8x8xf32, #tpu.memory_space<vmem>>, vector<1x1x8x8xf32>
    %27 = vector.shape_cast %26 : vector<1x1x8x8xf32> to vector<8x8xf32>
    %c0_31 = arith.constant 0 : index
    %c0_32 = arith.constant 0 : index
    %c0_33 = arith.constant 0 : index
    %c0_34 = arith.constant 0 : index
    %28 = vector.load %arg2[%c0_31, %c0_32, %c0_33, %c0_34] : memref<1x4x8x8xf32, #tpu.memory_space<vmem>>, vector<1x1x8x8xf32>
    %29 = vector.shape_cast %28 : vector<1x1x8x8xf32> to vector<8x8xf32>
    %c0_35 = arith.constant 0 : index
    %c2 = arith.constant 2 : index
    %c0_36 = arith.constant 0 : index
    %c0_37 = arith.constant 0 : index
    %30 = vector.load %arg2[%c0_35, %c2, %c0_36, %c0_37] : memref<1x4x8x8xf32, #tpu.memory_space<vmem>>, vector<1x1x8x8xf32>
    %31 = vector.shape_cast %30 : vector<1x1x8x8xf32> to vector<8x8xf32>
    %32 = arith.subf %29, %27 : vector<8x8xf32>
    %cst_38 = arith.constant 2.500000e-01 : f32
    %33 = vector.broadcast %cst_38 : f32 to vector<8x8xf32>
    %34 = arith.mulf %33, %32 : vector<8x8xf32>
    %35 = arith.addf %27, %34 : vector<8x8xf32>
    %36 = arith.subf %31, %27 : vector<8x8xf32>
    %cst_39 = arith.constant 2.500000e-01 : f32
    %37 = vector.broadcast %cst_39 : f32 to vector<8x8xf32>
    %38 = arith.mulf %37, %36 : vector<8x8xf32>
    %39 = arith.addf %27, %38 : vector<8x8xf32>
    %cst_40 = arith.constant dense<0.000000e+00> : vector<16x8xf32>
    %40 = tpu.matmul %0, %35, %cst_40 {dimension_numbers = #tpu.dot_dimension_numbers<[1], [0], [0], [1], [0, 0, 1, 1], [], []>} : vector<16x8xf32>, vector<8x8xf32>, vector<16x8xf32> -> vector<16x8xf32>
    %cst_41 = arith.constant dense<0.000000e+00> : vector<16x16xf32>
    %41 = tpu.matmul %40, %1, %cst_41 {dimension_numbers = #tpu.dot_dimension_numbers<[1], [0], [0], [1], [0, 0, 1, 1], [], []>} : vector<16x8xf32>, vector<8x16xf32>, vector<16x16xf32> -> vector<16x16xf32>
    %c0_42 = arith.constant 0 : index
    %c2_43 = arith.constant 2 : index
    %c0_44 = arith.constant 0 : index
    %c0_45 = arith.constant 0 : index
    %42 = vector.load %arg7[%c0_42, %c2_43, %c0_44, %c0_45] : memref<1x8x16x16xf32, #tpu.memory_space<vmem>>, vector<1x1x16x16xf32>
    %43 = vector.shape_cast %42 : vector<1x1x16x16xf32> to vector<16x16xf32>
    %44 = vector.shape_cast %41 : vector<16x16xf32> to vector<1x1x16x16xf32>
    tpu.vector_store %arg7[%c0_42, %c2_43, %c0_44, %c0_45], %44 {strides = array<i32>} : memref<1x8x16x16xf32, #tpu.memory_space<vmem>>, vector<1x1x16x16xf32>,
    %cst_46 = arith.constant dense<0.000000e+00> : vector<16x8xf32>
    %45 = tpu.matmul %0, %39, %cst_46 {dimension_numbers = #tpu.dot_dimension_numbers<[1], [0], [0], [1], [0, 0, 1, 1], [], []>} : vector<16x8xf32>, vector<8x8xf32>, vector<16x8xf32> -> vector<16x8xf32>
    %cst_47 = arith.constant dense<0.000000e+00> : vector<16x16xf32>
    %46 = tpu.matmul %45, %1, %cst_47 {dimension_numbers = #tpu.dot_dimension_numbers<[1], [0], [0], [1], [0, 0, 1, 1], [], []>} : vector<16x8xf32>, vector<8x16xf32>, vector<16x16xf32> -> vector<16x16xf32>
    %c0_48 = arith.constant 0 : index
    %c3 = arith.constant 3 : index
    %c0_49 = arith.constant 0 : index
    %c0_50 = arith.constant 0 : index
    %47 = vector.load %arg7[%c0_48, %c3, %c0_49, %c0_50] : memref<1x8x16x16xf32, #tpu.memory_space<vmem>>, vector<1x1x16x16xf32>
    %48 = vector.shape_cast %47 : vector<1x1x16x16xf32> to vector<16x16xf32>
    %49 = vector.shape_cast %46 : vector<16x16xf32> to vector<1x1x16x16xf32>
    tpu.vector_store %arg7[%c0_48, %c3, %c0_49, %c0_50], %49 {strides = array<i32>} : memref<1x8x16x16xf32, #tpu.memory_space<vmem>>, vector<1x1x16x16xf32>,
    %c0_51 = arith.constant 0 : index
    %c2_52 = arith.constant 2 : index
    %c0_53 = arith.constant 0 : index
    %c0_54 = arith.constant 0 : index
    %50 = vector.load %arg2[%c0_51, %c2_52, %c0_53, %c0_54] : memref<1x4x8x8xf32, #tpu.memory_space<vmem>>, vector<1x1x8x8xf32>
    %51 = vector.shape_cast %50 : vector<1x1x8x8xf32> to vector<8x8xf32>
    %c0_55 = arith.constant 0 : index
    %c1_56 = arith.constant 1 : index
    %c0_57 = arith.constant 0 : index
    %c0_58 = arith.constant 0 : index
    %52 = vector.load %arg2[%c0_55, %c1_56, %c0_57, %c0_58] : memref<1x4x8x8xf32, #tpu.memory_space<vmem>>, vector<1x1x8x8xf32>
    %53 = vector.shape_cast %52 : vector<1x1x8x8xf32> to vector<8x8xf32>
    %c0_59 = arith.constant 0 : index
    %c3_60 = arith.constant 3 : index
    %c0_61 = arith.constant 0 : index
    %c0_62 = arith.constant 0 : index
    %54 = vector.load %arg2[%c0_59, %c3_60, %c0_61, %c0_62] : memref<1x4x8x8xf32, #tpu.memory_space<vmem>>, vector<1x1x8x8xf32>
    %55 = vector.shape_cast %54 : vector<1x1x8x8xf32> to vector<8x8xf32>
    %56 = arith.subf %53, %51 : vector<8x8xf32>
    %cst_63 = arith.constant 2.500000e-01 : f32
    %57 = vector.broadcast %cst_63 : f32 to vector<8x8xf32>
    %58 = arith.mulf %57, %56 : vector<8x8xf32>
    %59 = arith.addf %51, %58 : vector<8x8xf32>
    %60 = arith.subf %55, %51 : vector<8x8xf32>
    %cst_64 = arith.constant 2.500000e-01 : f32
    %61 = vector.broadcast %cst_64 : f32 to vector<8x8xf32>
    %62 = arith.mulf %61, %60 : vector<8x8xf32>
    %63 = arith.addf %51, %62 : vector<8x8xf32>
    %cst_65 = arith.constant dense<0.000000e+00> : vector<16x8xf32>
    %64 = tpu.matmul %0, %59, %cst_65 {dimension_numbers = #tpu.dot_dimension_numbers<[1], [0], [0], [1], [0, 0, 1, 1], [], []>} : vector<16x8xf32>, vector<8x8xf32>, vector<16x8xf32> -> vector<16x8xf32>
    %cst_66 = arith.constant dense<0.000000e+00> : vector<16x16xf32>
    %65 = tpu.matmul %64, %1, %cst_66 {dimension_numbers = #tpu.dot_dimension_numbers<[1], [0], [0], [1], [0, 0, 1, 1], [], []>} : vector<16x8xf32>, vector<8x16xf32>, vector<16x16xf32> -> vector<16x16xf32>
    %c0_67 = arith.constant 0 : index
    %c4 = arith.constant 4 : index
    %c0_68 = arith.constant 0 : index
    %c0_69 = arith.constant 0 : index
    %66 = vector.load %arg7[%c0_67, %c4, %c0_68, %c0_69] : memref<1x8x16x16xf32, #tpu.memory_space<vmem>>, vector<1x1x16x16xf32>
    %67 = vector.shape_cast %66 : vector<1x1x16x16xf32> to vector<16x16xf32>
    %68 = vector.shape_cast %65 : vector<16x16xf32> to vector<1x1x16x16xf32>
    tpu.vector_store %arg7[%c0_67, %c4, %c0_68, %c0_69], %68 {strides = array<i32>} : memref<1x8x16x16xf32, #tpu.memory_space<vmem>>, vector<1x1x16x16xf32>,
    %cst_70 = arith.constant dense<0.000000e+00> : vector<16x8xf32>
    %69 = tpu.matmul %0, %63, %cst_70 {dimension_numbers = #tpu.dot_dimension_numbers<[1], [0], [0], [1], [0, 0, 1, 1], [], []>} : vector<16x8xf32>, vector<8x8xf32>, vector<16x8xf32> -> vector<16x8xf32>
    %cst_71 = arith.constant dense<0.000000e+00> : vector<16x16xf32>
    %70 = tpu.matmul %69, %1, %cst_71 {dimension_numbers = #tpu.dot_dimension_numbers<[1], [0], [0], [1], [0, 0, 1, 1], [], []>} : vector<16x8xf32>, vector<8x16xf32>, vector<16x16xf32> -> vector<16x16xf32>
    %c0_72 = arith.constant 0 : index
    %c5 = arith.constant 5 : index
    %c0_73 = arith.constant 0 : index
    %c0_74 = arith.constant 0 : index
    %71 = vector.load %arg7[%c0_72, %c5, %c0_73, %c0_74] : memref<1x8x16x16xf32, #tpu.memory_space<vmem>>, vector<1x1x16x16xf32>
    %72 = vector.shape_cast %71 : vector<1x1x16x16xf32> to vector<16x16xf32>
    %73 = vector.shape_cast %70 : vector<16x16xf32> to vector<1x1x16x16xf32>
    tpu.vector_store %arg7[%c0_72, %c5, %c0_73, %c0_74], %73 {strides = array<i32>} : memref<1x8x16x16xf32, #tpu.memory_space<vmem>>, vector<1x1x16x16xf32>,
    %c0_75 = arith.constant 0 : index
    %c3_76 = arith.constant 3 : index
    %c0_77 = arith.constant 0 : index
    %c0_78 = arith.constant 0 : index
    %74 = vector.load %arg2[%c0_75, %c3_76, %c0_77, %c0_78] : memref<1x4x8x8xf32, #tpu.memory_space<vmem>>, vector<1x1x8x8xf32>
    %75 = vector.shape_cast %74 : vector<1x1x8x8xf32> to vector<8x8xf32>
    %c0_79 = arith.constant 0 : index
    %c2_80 = arith.constant 2 : index
    %c0_81 = arith.constant 0 : index
    %c0_82 = arith.constant 0 : index
    %76 = vector.load %arg2[%c0_79, %c2_80, %c0_81, %c0_82] : memref<1x4x8x8xf32, #tpu.memory_space<vmem>>, vector<1x1x8x8xf32>
    %77 = vector.shape_cast %76 : vector<1x1x8x8xf32> to vector<8x8xf32>
    %c0_83 = arith.constant 0 : index
    %c0_84 = arith.constant 0 : index
    %c0_85 = arith.constant 0 : index
    %c0_86 = arith.constant 0 : index
    %78 = vector.load %arg4[%c0_83, %c0_84, %c0_85, %c0_86] : memref<1x1x8x8xf32, #tpu.memory_space<vmem>>, vector<1x1x8x8xf32>
    %79 = vector.shape_cast %78 : vector<1x1x8x8xf32> to vector<8x8xf32>
    %80 = arith.subf %77, %75 : vector<8x8xf32>
    %cst_87 = arith.constant 2.500000e-01 : f32
    %81 = vector.broadcast %cst_87 : f32 to vector<8x8xf32>
    %82 = arith.mulf %81, %80 : vector<8x8xf32>
    %83 = arith.addf %75, %82 : vector<8x8xf32>
    %84 = arith.subf %79, %75 : vector<8x8xf32>
    %cst_88 = arith.constant 2.500000e-01 : f32
    %85 = vector.broadcast %cst_88 : f32 to vector<8x8xf32>
    %86 = arith.mulf %85, %84 : vector<8x8xf32>
    %87 = arith.addf %75, %86 : vector<8x8xf32>
    %cst_89 = arith.constant dense<0.000000e+00> : vector<16x8xf32>
    %88 = tpu.matmul %0, %83, %cst_89 {dimension_numbers = #tpu.dot_dimension_numbers<[1], [0], [0], [1], [0, 0, 1, 1], [], []>} : vector<16x8xf32>, vector<8x8xf32>, vector<16x8xf32> -> vector<16x8xf32>
    %cst_90 = arith.constant dense<0.000000e+00> : vector<16x16xf32>
    %89 = tpu.matmul %88, %1, %cst_90 {dimension_numbers = #tpu.dot_dimension_numbers<[1], [0], [0], [1], [0, 0, 1, 1], [], []>} : vector<16x8xf32>, vector<8x16xf32>, vector<16x16xf32> -> vector<16x16xf32>
    %c0_91 = arith.constant 0 : index
    %c6 = arith.constant 6 : index
    %c0_92 = arith.constant 0 : index
    %c0_93 = arith.constant 0 : index
    %90 = vector.load %arg7[%c0_91, %c6, %c0_92, %c0_93] : memref<1x8x16x16xf32, #tpu.memory_space<vmem>>, vector<1x1x16x16xf32>
    %91 = vector.shape_cast %90 : vector<1x1x16x16xf32> to vector<16x16xf32>
    %92 = vector.shape_cast %89 : vector<16x16xf32> to vector<1x1x16x16xf32>
    tpu.vector_store %arg7[%c0_91, %c6, %c0_92, %c0_93], %92 {strides = array<i32>} : memref<1x8x16x16xf32, #tpu.memory_space<vmem>>, vector<1x1x16x16xf32>,
    %cst_94 = arith.constant dense<0.000000e+00> : vector<16x8xf32>
    %93 = tpu.matmul %0, %87, %cst_94 {dimension_numbers = #tpu.dot_dimension_numbers<[1], [0], [0], [1], [0, 0, 1, 1], [], []>} : vector<16x8xf32>, vector<8x8xf32>, vector<16x8xf32> -> vector<16x8xf32>
    %cst_95 = arith.constant dense<0.000000e+00> : vector<16x16xf32>
    %94 = tpu.matmul %93, %1, %cst_95 {dimension_numbers = #tpu.dot_dimension_numbers<[1], [0], [0], [1], [0, 0, 1, 1], [], []>} : vector<16x8xf32>, vector<8x16xf32>, vector<16x16xf32> -> vector<16x16xf32>
    %c0_96 = arith.constant 0 : index
    %c7 = arith.constant 7 : index
    %c0_97 = arith.constant 0 : index
    %c0_98 = arith.constant 0 : index
    %95 = vector.load %arg7[%c0_96, %c7, %c0_97, %c0_98] : memref<1x8x16x16xf32, #tpu.memory_space<vmem>>, vector<1x1x16x16xf32>
    %96 = vector.shape_cast %95 : vector<1x1x16x16xf32> to vector<16x16xf32>
    %97 = vector.shape_cast %94 : vector<16x16xf32> to vector<1x1x16x16xf32>
    tpu.vector_store %arg7[%c0_96, %c7, %c0_97, %c0_98], %97 {strides = array<i32>} : memref<1x8x16x16xf32, #tpu.memory_space<vmem>>, vector<1x1x16x16xf32>,
    return
  }
  func.func @transform_0(%arg0: i32, %arg1: i32) -> (i32, i32, i32, i32) {
    %c0_i32 = arith.constant 0 : i32
    %c0_i32_0 = arith.constant 0 : i32
    %c0_i32_1 = arith.constant 0 : i32
    return %arg0, %arg1, %c0_i32, %c0_i32_0 : i32, i32, i32, i32
  }
  func.func @transform_1(%arg0: i32, %arg1: i32) -> (i32, i32, i32, i32) {
    %c4_i32 = arith.constant 4 : i32
    %0 = arith.muli %arg1, %c4_i32 : i32
    %c1_i32 = arith.constant 1 : i32
    %1 = arith.subi %0, %c1_i32 : i32
    %c0_i32 = arith.constant 0 : i32
    %2 = arith.maxsi %1, %c0_i32 : i32
    %c0_i32_0 = arith.constant 0 : i32
    %c0_i32_1 = arith.constant 0 : i32
    %c0_i32_2 = arith.constant 0 : i32
    return %arg0, %2, %c0_i32_0, %c0_i32_1 : i32, i32, i32, i32
  }
  func.func @transform_2(%arg0: i32, %arg1: i32) -> (i32, i32, i32, i32) {
    %c4_i32 = arith.constant 4 : i32
    %0 = arith.muli %arg1, %c4_i32 : i32
    %c4_i32_0 = arith.constant 4 : i32
    %1 = arith.addi %0, %c4_i32_0 : i32
    %c3_i32 = arith.constant 3 : i32
    %2 = arith.minsi %1, %c3_i32 : i32
    %c0_i32 = arith.constant 0 : i32
    %c0_i32_1 = arith.constant 0 : i32
    %c0_i32_2 = arith.constant 0 : i32
    return %arg0, %2, %c0_i32, %c0_i32_1 : i32, i32, i32, i32
  }
  func.func @transform_3(%arg0: i32, %arg1: i32) -> (i32, i32) {
    %c0_i32 = arith.constant 0 : i32
    %c0_i32_0 = arith.constant 0 : i32
    %c0_i32_1 = arith.constant 0 : i32
    return %c0_i32, %c0_i32_0 : i32, i32
  }
  func.func @transform_4(%arg0: i32, %arg1: i32) -> (i32, i32) {
    %c0_i32 = arith.constant 0 : i32
    %c0_i32_0 = arith.constant 0 : i32
    %c0_i32_1 = arith.constant 0 : i32
    return %c0_i32, %c0_i32_0 : i32, i32
  }
  func.func @transform_5(%arg0: i32, %arg1: i32) -> (i32, i32, i32, i32) {
    %c0_i32 = arith.constant 0 : i32
    %c0_i32_0 = arith.constant 0 : i32
    %c0_i32_1 = arith.constant 0 : i32
    return %arg0, %arg1, %c0_i32, %c0_i32_0 : i32, i32, i32, i32
  }
}

</mosaic_0001>

<llo_original>
// kernel: tpu_custom_call.1
$region0: #{tpu_custom_call.1}
  #allocation0 [shape = 'u32[]', space=smem, size = 0x4, offset = 0x4, fixed_abs, tag = 'smem constant byte address 0x4 - core index']
  #allocation1 [shape = 'u32[144,128]{1,0:T(1,128)}', space=vmem, size = 0x12000, scoped, tag = 'internal scratch']
  %s0 = inlined_call_operand.hbm [shape: f32[8,4,8,8], index: 0, kind: input, shape index: {}]
  %s1 = inlined_call_operand.hbm [shape: f32[8,4,8,8], index: 1, kind: input, shape index: {}]
  %s2 = inlined_call_operand.hbm [shape: f32[8,4,8,8], index: 2, kind: input, shape index: {}]
  %s3 = inlined_call_operand.vmem [shape: f32[16,8], index: 3, kind: input, shape index: {}]
  %s4 = inlined_call_operand.vmem [shape: f32[8,16], index: 4, kind: input, shape index: {}]
  %s5 = inlined_call_operand.hbm [shape: f32[8,8,16,16], index: 5, kind: output, shape index: {}]
  %s6 = sld [smem:[#allocation0]]
  $region65: #{tpu_custom_call.1} parent=0
    _
  %s8 = ssub.s32 1, %s6
  %s9 = scalar_select 0, %s8, %s6
  $region1: #{tpu_custom_call.1} parent=0
    #allocation2 [shape = 'u8[32768]{0}', space=vmem, size = 0x8000, scoped, tag = 'input window, operand 0']
    #allocation3 [shape = 's32[2]{0}', space=sflag, size = 0x8, scoped, tag = 'scoped memory for tpu_custom_call.1']
    #allocation4 [shape = 's32[2]{0}', space=sflag, size = 0x8, scoped, tag = 'scoped memory for tpu_custom_call.1']
    #allocation5 [shape = 'u8[8192]{0}', space=vmem, size = 0x2000, scoped, tag = 'input window, operand 1']
    #allocation6 [shape = 's32[2]{0}', space=sflag, size = 0x8, scoped, tag = 'scoped memory for tpu_custom_call.1']
    #allocation7 [shape = 'u8[8192]{0}', space=vmem, size = 0x2000, scoped, tag = 'input window, operand 2']
    #allocation8 [shape = 'u8[131072]{0}', space=vmem, size = 0x20000, scoped, tag = 'output window, operand 0']
    %10 = vsyncpa [#allocation3], 0
    %s11 = scalar_lea.sflag [#allocation3], 1
    %12 = vsyncpa %s11, 0
    %13 = vsyncpa [#allocation6], 0
    %s14 = scalar_lea.sflag [#allocation6], 1
    %15 = vsyncpa %s14, 0
    %16 = vsyncpa [#allocation4], 0
    %s17 = scalar_lea.sflag [#allocation4], 1
    %18 = vsyncpa %s17, 0
    loop: start=0, step=1, limit=10
    $region2: #{tpu_custom_call.1} parent=1 // loop_pre_header
      _
    $region3: #{tpu_custom_call.1} parent=1 // loop_header
      %s20 = sphi 0, %s24
      %p21 = scmp.ge.s32.totalorder %s20, 10
      %s27 = sphi 0, %s39
      %s28 = sphi 0, %s35
      %s29 = sphi 0, %s27
      %s30 = sphi 0, %s28
      %s31 = sphi 0, %s29
      %s32 = sphi 0, %s30
      %s44 = sphi 0, %s46
      %s47 = sphi 0, %s44
      %s48 = sphi 0, %s47
      %s64 = sphi 0, %s48
      %s80 = sphi 0, %s82
      %s83 = sphi 0, %s80
      %s84 = sphi 0, %s83
      %s100 = sphi 0, %s84
      %s116 = sphi 0, %s118
      %s119 = sphi 0, %s116
      %s120 = sphi 0, %s119
      %s136 = sphi 0, %s120
      %s140 = sphi 0, %s140
      %s142 = sphi 0, %s140
      %s143 = sphi 0, %s142
      %s157 = sphi 0, %s143
      %s161 = sphi 0, %s161
      %s163 = sphi 0, %s161
      %s164 = sphi 0, %s163
      %s178 = sphi 0, %s164
      %s186 = sphi 0, %s188
      %s189 = sphi 0, %s186
      %s190 = sphi 0, %s189
      %s206 = sphi 0, %s190
    $region4: #{tpu_custom_call.1} parent=1 // loop_header_branch
      %23 = sbr.rel (%p21) target = $region8
    $region5: #{tpu_custom_call.1} parent=1 // loop_body
      %s25 = ssub.s32 %s20, 1
      %s26 = ssub.s32 %s20, 2
      %s33 = sadd.s32 1, %s28
      %p34 = scmp.ge.s32.totalorder %s33, 1
      %s35 = scalar_select %p34, 0, %s33
      %s36 = sadd.s32 1, %s27
      %s37 = scalar_select %p34, %s36, %s27
      %p38 = scmp.ge.s32.totalorder %s37, 8
      %s39 = scalar_select %p38, 0, %s37
      %s40 = ssub.s32 %s27, %s39
      %s41 = ssub.s32 %s28, %s35
      %s42 = sor.u32 %s40, %s41
      %p43 = scmp.eq.s32.totalorder %s42, 0
      %s45 = sadd.s32 %s44, 1
      %s46 = scalar_select %p43, %s44, %s45
      %p49 = pneg %p43
      %p50 = scmp.eq.s32.totalorder %s20, 7
      %p51 = por %p49, %p50
      %p52 = scmp.ne.s32.totalorder %s44, %s47
      %p53 = scmp.eq.s32.totalorder %s20, 0
      %p54 = por %p52, %p53
      %p55 = scmp.ne.s32.totalorder %s44, %s47
      %p56 = scmp.eq.s32.totalorder %s25, 7
      %p57 = por %p55, %p56
      %p58 = scmp.ne.s32.totalorder %s47, %s48
      %p59 = scmp.eq.s32.totalorder %s25, 0
      %p60 = por %p58, %p59
      %p61 = scmp.ne.s32.totalorder %s47, %s48
      %p62 = scmp.eq.s32.totalorder %s26, 7
      %p63 = por %p61, %p62
      %p65 = scmp.ne.s32.totalorder %s48, %s64
      %p66 = scmp.eq.s32.totalorder %s26, 0
      %p67 = por %p65, %p66
      %s68 = smul.u32 %s28, 4
      %s69 = ssub.s32 %s68, 1
      %p70 = scmp.gt.s32.totalorder %s69, 0
      %s71 = scalar_select %p70, %s69, 0
      %s72 = smul.u32 %s35, 4
      %s73 = ssub.s32 %s72, 1
      %p74 = scmp.gt.s32.totalorder %s73, 0
      %s75 = scalar_select %p74, %s73, 0
      %s76 = ssub.s32 %s27, %s39
      %s77 = ssub.s32 %s71, %s75
      %s78 = sor.u32 %s76, %s77
      %p79 = scmp.eq.s32.totalorder %s78, 0
      %s81 = sadd.s32 %s80, 1
      %s82 = scalar_select %p79, %s80, %s81
      %p85 = pneg %p79
      %p86 = scmp.eq.s32.totalorder %s20, 7
      %p87 = por %p85, %p86
      %p88 = scmp.ne.s32.totalorder %s80, %s83
      %p89 = scmp.eq.s32.totalorder %s20, 0
      %p90 = por %p88, %p89
      %p91 = scmp.ne.s32.totalorder %s80, %s83
      %p92 = scmp.eq.s32.totalorder %s25, 7
      %p93 = por %p91, %p92
      %p94 = scmp.ne.s32.totalorder %s83, %s84
      %p95 = scmp.eq.s32.totalorder %s25, 0
      %p96 = por %p94, %p95
      %p97 = scmp.ne.s32.totalorder %s83, %s84
      %p98 = scmp.eq.s32.totalorder %s26, 7
      %p99 = por %p97, %p98
      %p101 = scmp.ne.s32.totalorder %s84, %s100
      %p102 = scmp.eq.s32.totalorder %s26, 0
      %p103 = por %p101, %p102
      %s104 = smul.u32 %s28, 4
      %s105 = sadd.s32 %s104, 4
      %p106 = scmp.lt.s32.totalorder %s105, 3
      %s107 = scalar_select %p106, %s105, 3
      %s108 = smul.u32 %s35, 4
      %s109 = sadd.s32 %s108, 4
      %p110 = scmp.lt.s32.totalorder %s109, 3
      %s111 = scalar_select %p110, %s109, 3
      %s112 = ssub.s32 %s27, %s39
      %s113 = ssub.s32 %s107, %s111
      %s114 = sor.u32 %s112, %s113
      %p115 = scmp.eq.s32.totalorder %s114, 0
      %s117 = sadd.s32 %s116, 1
      %s118 = scalar_select %p115, %s116, %s117
      %p121 = pneg %p115
      %p122 = scmp.eq.s32.totalorder %s20, 7
      %p123 = por %p121, %p122
      %p124 = scmp.ne.s32.totalorder %s116, %s119
      %p125 = scmp.eq.s32.totalorder %s20, 0
      %p126 = por %p124, %p125
      %p127 = scmp.ne.s32.totalorder %s116, %s119
      %p128 = scmp.eq.s32.totalorder %s25, 7
      %p129 = por %p127, %p128
      %p130 = scmp.ne.s32.totalorder %s119, %s120
      %p131 = scmp.eq.s32.totalorder %s25, 0
      %p132 = por %p130, %p131
      %p133 = scmp.ne.s32.totalorder %s119, %s120
      %p134 = scmp.eq.s32.totalorder %s26, 7
      %p135 = por %p133, %p134
      %p137 = scmp.ne.s32.totalorder %s120, %s136
      %p138 = scmp.eq.s32.totalorder %s26, 0
      %p139 = por %p137, %p138
      %s141 = sadd.s32 %s140, 1
      %p144 = scmp.eq.s32.totalorder %s20, 7
      %p145 = scmp.ne.s32.totalorder %s140, %s142
      %p146 = scmp.eq.s32.totalorder %s20, 0
      %p147 = por %p145, %p146
      %p148 = scmp.ne.s32.totalorder %s140, %s142
      %p149 = scmp.eq.s32.totalorder %s25, 7
      %p150 = por %p148, %p149
      %p151 = scmp.ne.s32.totalorder %s142, %s143
      %p152 = scmp.eq.s32.totalorder %s25, 0
      %p153 = por %p151, %p152
      %p154 = scmp.ne.s32.totalorder %s142, %s143
      %p155 = scmp.eq.s32.totalorder %s26, 7
      %p156 = por %p154, %p155
      %p158 = scmp.ne.s32.totalorder %s143, %s157
      %p159 = scmp.eq.s32.totalorder %s26, 0
      %p160 = por %p158, %p159
      %s162 = sadd.s32 %s161, 1
      %p165 = scmp.eq.s32.totalorder %s20, 7
      %p166 = scmp.ne.s32.totalorder %s161, %s163
      %p167 = scmp.eq.s32.totalorder %s20, 0
      %p168 = por %p166, %p167
      %p169 = scmp.ne.s32.totalorder %s161, %s163
      %p170 = scmp.eq.s32.totalorder %s25, 7
      %p171 = por %p169, %p170
      %p172 = scmp.ne.s32.totalorder %s163, %s164
      %p173 = scmp.eq.s32.totalorder %s25, 0
      %p174 = por %p172, %p173
      %p175 = scmp.ne.s32.totalorder %s163, %s164
      %p176 = scmp.eq.s32.totalorder %s26, 7
      %p177 = por %p175, %p176
      %p179 = scmp.ne.s32.totalorder %s164, %s178
      %p180 = scmp.eq.s32.totalorder %s26, 0
      %p181 = por %p179, %p180
      %s182 = ssub.s32 %s27, %s39
      %s183 = ssub.s32 %s28, %s35
      %s184 = sor.u32 %s182, %s183
      %p185 = scmp.eq.s32.totalorder %s184, 0
      %s187 = sadd.s32 %s186, 1
      %s188 = scalar_select %p185, %s186, %s187
      %p191 = pneg %p185
      %p192 = scmp.eq.s32.totalorder %s20, 7
      %p193 = por %p191, %p192
      %p194 = scmp.ne.s32.totalorder %s186, %s189
      %p195 = scmp.eq.s32.totalorder %s20, 0
      %p196 = por %p194, %p195
      %p197 = scmp.ne.s32.totalorder %s186, %s189
      %p198 = scmp.eq.s32.totalorder %s25, 7
      %p199 = por %p197, %p198
      %p200 = scmp.ne.s32.totalorder %s189, %s190
      %p201 = scmp.eq.s32.totalorder %s25, 0
      %p202 = por %p200, %p201
      %p203 = scmp.ne.s32.totalorder %s189, %s190
      %p204 = scmp.eq.s32.totalorder %s26, 7
      %p205 = por %p203, %p204
      %p207 = scmp.ne.s32.totalorder %s190, %s206
      %p208 = scmp.eq.s32.totalorder %s26, 0
      %p209 = por %p207, %p208
      %p210 = scmp.le.s32.totalorder 1, %s20
      %p211 = scmp.lt.s32.totalorder %s20, 9
      %p212 = pnand %p210, %p211
      %p213 = pneg %p212
      // Predicated region
      $region9: #{tpu_custom_call.1} parent=5 // pred_check
        _
      $region10: #{tpu_custom_call.1} parent=5 // pred_check_branch
        %215 = sbr.rel (%p212) target = $region12
      $region11: #{tpu_custom_call.1} parent=5 // pred_region
        %s216 = ssub.s32 %s20, 1
        // Predicated region
        $region13: #{tpu_custom_call.1} parent=11 // pred_check
          %p217 = pneg %p153
        $region14: #{tpu_custom_call.1} parent=11 // pred_check_branch
          %219 = sbr.rel (%p217) target = $region16
        $region15: #{tpu_custom_call.1} parent=11 // pred_region
          _
        $region16: #{tpu_custom_call.1} parent=11 // pred_fallthru
          _
        // Predicated region
        $region17: #{tpu_custom_call.1} parent=11 // pred_check
          %p220 = pneg %p174
        $region18: #{tpu_custom_call.1} parent=11 // pred_check_branch
          %222 = sbr.rel (%p220) target = $region20
        $region19: #{tpu_custom_call.1} parent=11 // pred_region
          _
        $region20: #{tpu_custom_call.1} parent=11 // pred_fallthru
          _
      $region12: #{tpu_custom_call.1} parent=5 // pred_fallthru
        _
      %p223 = scmp.lt.s32.totalorder %s20, 8
      // Predicated region
      $region21: #{tpu_custom_call.1} parent=5 // pred_check
        %p224 = pneg %p223
      $region22: #{tpu_custom_call.1} parent=5 // pred_check_branch
        %226 = sbr.rel (%p224) target = $region24
      $region23: #{tpu_custom_call.1} parent=5 // pred_region
        // Predicated region
        $region25: #{tpu_custom_call.1} parent=23 // pred_check
          %p227 = pneg %p54
        $region26: #{tpu_custom_call.1} parent=23 // pred_check_branch
          %229 = sbr.rel (%p227) target = $region28
        $region27: #{tpu_custom_call.1} parent=23 // pred_region
          %s230 = sand.u32 %s44, 1
          %s231 = scalar_lea.sflag [#allocation3], %s230
          %s232 = sand.u32 %s44, 1
          %s233 = smul.addr %s232, 32
          %s234 = scalar_lea.vmem [#allocation2], %s233
          %s235 = smul.u32 4, %s28
          %s237 = ssub.s32 512, 512
          %238 = vsyncadd %s231, %s237
          %s239 = smul.addr %s27, 4
          %s240 = sadd.s32 %s235, %s239
          %s241 = smul.addr %s240, 128
          %s242 = scalar_lea.hbm %s0, %s241
          %s243 = sshll.u32 %s234, 4
          %s244 = int_to_ptr.vmem [resolvable:$true] %s243
          %249 = dma.hbm_to_vmem [thread:$0]  %s242, 512, %s244, %s231, 128, 128, 8
        $region28: #{tpu_custom_call.1} parent=23 // pred_fallthru
          _
        // Predicated region
        $region29: #{tpu_custom_call.1} parent=23 // pred_check
          %p250 = pneg %p90
        $region30: #{tpu_custom_call.1} parent=23 // pred_check_branch
          %252 = sbr.rel (%p250) target = $region32
        $region31: #{tpu_custom_call.1} parent=23 // pred_region
          %s253 = sand.u32 %s20, 1
          %s254 = scalar_lea.sflag [#allocation6], %s253
          %s255 = sand.u32 %s80, 1
          %s256 = smul.addr %s255, 8
          %s257 = scalar_lea.vmem [#allocation5], %s256
          %s258 = smul.u32 %s28, 4
          %s259 = ssub.s32 %s258, 1
          %p260 = scmp.gt.s32.totalorder %s259, 0
          %s261 = scalar_select %p260, %s259, 0
          %s263 = ssub.s32 128, 128
          %264 = vsyncadd %s254, %s263
          %s265 = smul.addr %s27, 4
          %s266 = sadd.s32 %s261, %s265
          %s267 = smul.addr %s266, 128
          %s268 = scalar_lea.hbm %s1, %s267
          %s270 = sshll.u32 %s257, 4
          %s271 = int_to_ptr.vmem [resolvable:$true] %s270
          %273 = dma.hbm_to_vmem [thread:$0]  %s268, 128, %s271, %s254
        $region32: #{tpu_custom_call.1} parent=23 // pred_fallthru
          _
        // Predicated region
        $region33: #{tpu_custom_call.1} parent=23 // pred_check
          %p274 = pneg %p126
        $region34: #{tpu_custom_call.1} parent=23 // pred_check_branch
          %276 = sbr.rel (%p274) target = $region36
        $region35: #{tpu_custom_call.1} parent=23 // pred_region
          %s277 = sand.u32 %s20, 1
          %s278 = scalar_lea.sflag [#allocation6], %s277
          %s279 = sand.u32 %s116, 1
          %s280 = smul.addr %s279, 8
          %s281 = scalar_lea.vmem [#allocation7], %s280
          %s282 = smul.u32 %s28, 4
          %s283 = sadd.s32 %s282, 4
          %p284 = scmp.lt.s32.totalorder %s283, 3
          %s285 = scalar_select %p284, %s283, 3
          %s287 = ssub.s32 128, 128
          %288 = vsyncadd %s278, %s287
          %s289 = smul.addr %s27, 4
          %s290 = sadd.s32 %s285, %s289
          %s291 = smul.addr %s290, 128
          %s292 = scalar_lea.hbm %s2, %s291
          %s294 = sshll.u32 %s281, 4
          %s295 = int_to_ptr.vmem [resolvable:$true] %s294
          %297 = dma.hbm_to_vmem [thread:$0]  %s292, 128, %s295, %s278
        $region36: #{tpu_custom_call.1} parent=23 // pred_fallthru
          _
      $region24: #{tpu_custom_call.1} parent=5 // pred_fallthru
        _
      %p298 = scmp.le.s32.totalorder 1, %s20
      %p299 = scmp.lt.s32.totalorder %s20, 9
      %p300 = pnand %p298, %p299
      %p301 = pneg %p300
      // Predicated region
      $region37: #{tpu_custom_call.1} parent=5 // pred_check
        _
      $region38: #{tpu_custom_call.1} parent=5 // pred_check_branch
        %303 = sbr.rel (%p300) target = $region40
      $region39: #{tpu_custom_call.1} parent=5 // pred_region
        %s304 = ssub.s32 %s20, 1
        %s305 = sand.u32 %s47, 1
        %s306 = scalar_lea.sflag [#allocation3], %s305
        %s307 = sand.u32 %s47, 1
        %s308 = smul.addr %s307, 32
        %s309 = scalar_lea.vmem [#allocation2], %s308
        // Predicated region
        $region41: #{tpu_custom_call.1} parent=39 // pred_check
          %p310 = pneg %p60
        $region42: #{tpu_custom_call.1} parent=39 // pred_check_branch
          %312 = sbr.rel (%p310) target = $region44
        $region43: #{tpu_custom_call.1} parent=39 // pred_region
          %313 = dma.done %s306, 512
        $region44: #{tpu_custom_call.1} parent=39 // pred_fallthru
          _
        %s314 = sand.u32 %s25, 1
        %s315 = scalar_lea.sflag [#allocation6], %s314
        %s316 = sand.u32 %s83, 1
        %s317 = smul.addr %s316, 8
        %s318 = scalar_lea.vmem [#allocation5], %s317
        // Predicated region
        $region45: #{tpu_custom_call.1} parent=39 // pred_check
          %p319 = pneg %p96
        $region46: #{tpu_custom_call.1} parent=39 // pred_check_branch
          %321 = sbr.rel (%p319) target = $region48
        $region47: #{tpu_custom_call.1} parent=39 // pred_region
          %322 = dma.done %s315, 128
        $region48: #{tpu_custom_call.1} parent=39 // pred_fallthru
          _
        %s323 = sand.u32 %s25, 1
        %s324 = scalar_lea.sflag [#allocation6], %s323
        %s325 = sand.u32 %s119, 1
        %s326 = smul.addr %s325, 8
        %s327 = scalar_lea.vmem [#allocation7], %s326
        // Predicated region
        $region49: #{tpu_custom_call.1} parent=39 // pred_check
          %p328 = pneg %p132
        $region50: #{tpu_custom_call.1} parent=39 // pred_check_branch
          %330 = sbr.rel (%p328) target = $region52
        $region51: #{tpu_custom_call.1} parent=39 // pred_region
          %331 = dma.done %s324, 128
        $region52: #{tpu_custom_call.1} parent=39 // pred_fallthru
          _
        %s332 = sand.u32 %s47, 1
        %s333 = scalar_lea.sflag [#allocation3], %s332
        %s334 = sand.u32 %s47, 1
        %s335 = smul.addr %s334, 32
        %s336 = scalar_lea.vmem [#allocation2], %s335
        %p337 = pneg %p60
        %p338 = pneg %p57
        %s339 = sand.u32 %s25, 1
        %s340 = scalar_lea.sflag [#allocation6], %s339
        %s341 = sand.u32 %s83, 1
        %s342 = smul.addr %s341, 8
        %s343 = scalar_lea.vmem [#allocation5], %s342
        %p344 = pneg %p96
        %p345 = pneg %p93
        %s346 = sand.u32 %s25, 1
        %s347 = scalar_lea.sflag [#allocation6], %s346
        %s348 = sand.u32 %s119, 1
        %s349 = smul.addr %s348, 8
        %s350 = scalar_lea.vmem [#allocation7], %s349
        %p351 = pneg %p132
        %p352 = pneg %p129
        %p353 = pneg %p153
        %p354 = pneg %p150
        %p355 = pneg %p174
        %p356 = pneg %p171
        %p357 = pneg %p202
        %p358 = pneg %p199
        %s359 = sand.u32 %s189, 1
        %s360 = scalar_lea.sflag [#allocation4], %s359
        %s361 = sand.u32 %s189, 1
        %s362 = smul.addr %s361, 128
        %s363 = scalar_lea.vmem [#allocation8], %s362
        %s364 = smul.u32 4, %s30
        %s365 = smul.u32 %s30, 4
        %s366 = ssub.s32 %s365, 1
        %p367 = scmp.gt.s32.totalorder %s366, 0
        %s368 = scalar_select %p367, %s366, 0
        %s369 = smul.u32 %s30, 4
        %s370 = sadd.s32 %s369, 4
        %p371 = scmp.lt.s32.totalorder %s370, 3
        %s372 = scalar_select %p371, %s370, 3
        %s373 = smul.u32 8, %s30
        %v374 = vld [vmem:[%s3] sm:$0xff]
        %v375 = vld [vmem:[%s3 + $0x8] sm:$0xff]
        %v376 = vld [vmem:[%s4] sm:$0xff]
        %v377 = vld [vmem:[%s309] sm:$0xff]
        %v378 = vld [vmem:[%s318] sm:$0xff]
        %s379 = scalar_lea.vmem %s309, 8 [#allocation2]
        %v380 = vld [vmem:[%s379] sm:$0xff]
        %v381 = vsub.f32 %v378, %v377
        %v382 = vmul.f32 %v381, 0.25
        %v383 = vadd.f32 %v377, %v382
        %v384 = vsub.f32 %v380, %v377
        %v385 = vmul.f32 %v384, 0.25
        %v386 = vadd.f32 %v377, %v385
        %vm387 = vcmask 64512
        %v389 = vsel %vm387, %v374, 0
        %v392 = vsel %vm387, %v375, 0
        %394 = vmatprep.subr.mxu0 0.0
        %395 = vmatpush1.msra.mxu0 %v383
        %396 = vmatprep.subr.mxu0 0.0
        %397 = vmatpush1.msra.mxu0 0.0
        %398 = vmatprep.subr.mxu0 0.0
        %399 = vmatpush1.msra.mxu0 0.0
        %400 = vmatprep.subr.mxu0 0.0
        %401 = vmatpush1.msra.mxu0 0.0
        %402 = vmatprep.subr.mxu0 0.0
        %403 = vmatpush1.msra.mxu0 0.0
        %404 = vmatprep.subr.mxu0 0.0
        %405 = vmatpush1.msra.mxu0 0.0
        %406 = vmatprep.subr.mxu0 0.0
        %407 = vmatpush1.msra.mxu0 0.0
        %408 = vmatprep.subr.mxu0 0.0
        %409 = vmatpush1.msra.mxu0 0.0
        %410 = vmatprep.subr.mxu0 0.0
        %411 = vmatpush1.msra.mxu0 0.0
        %412 = vmatprep.subr.mxu0 0.0
        %413 = vmatpush1.msra.mxu0 0.0
        %414 = vmatprep.subr.mxu0 0.0
        %415 = vmatpush1.msra.mxu0 0.0
        %416 = vmatprep.subr.mxu0 0.0
        %417 = vmatpush1.msra.mxu0 0.0
        %418 = vmatprep.subr.mxu0 0.0
        %419 = vmatpush1.msra.mxu0 0.0
        %420 = vmatprep.subr.mxu0 0.0
        %421 = vmatpush1.msra.mxu0 0.0
        %422 = vmatprep.subr.mxu0 0.0
        %423 = vmatpush1.msra.mxu0 0.0
        %424 = vmatprep.subr.mxu0 0.0
        %425 = vmatpush1.msra.mxu0 0.0
        %426 = vmatprep.subr.mxu0 0.0
        %427 = vmatpush1.msra.mxu0 0.0
        %428 = vmatprep.subr.mxu0 0.0
        %429 = vmatpush1.msra.mxu0 0.0
        %430 = vmatprep.subr.mxu0 0.0
        %431 = vmatpush1.msra.mxu0 0.0
        %432 = vmatprep.subr.mxu0 0.0
        %433 = vmatpush1.msra.mxu0 0.0
        %434 = vmatprep.subr.mxu0 0.0
        %435 = vmatpush1.msra.mxu0 0.0
        %436 = vmatprep.subr.mxu0 0.0
        %437 = vmatpush1.msra.mxu0 0.0
        %438 = vmatprep.subr.mxu0 0.0
        %439 = vmatpush1.msra.mxu0 0.0
        %440 = vmatprep.subr.mxu0 0.0
        %441 = vmatpush1.msra.mxu0 0.0
        %442 = vmatprep.subr.mxu0 0.0
        %443 = vmatpush1.msra.mxu0 0.0
        %444 = vmatprep.subr.mxu0 0.0
        %445 = vmatpush1.msra.mxu0 0.0
        %446 = vmatprep.subr.mxu0 0.0
        %447 = vmatpush1.msra.mxu0 0.0
        %448 = vmatprep.subr.mxu0 0.0
        %449 = vmatpush1.msra.mxu0 0.0
        %450 = vmatprep.subr.mxu0 0.0
        %451 = vmatpush1.msra.mxu0 0.0
        %452 = vmatprep.subr.mxu0 0.0
        %453 = vmatpush1.msra.mxu0 0.0
        %454 = vmatprep.subr.mxu0 0.0
        %455 = vmatpush1.msra.mxu0 0.0
        %456 = vmatprep.subr.mxu0 0.0
        %457 = vmatpush1.msra.mxu0 0.0
        %458 = vmatprep.mubr.f32.mxu0 0.0
        %459 = vmatmul.mubr.f32.gmra.mrb[0].mxu0 %v389
        %v460 = vpop.f32.mrb[0].mxu0
        %v461 = vadd.f32 0.0, %v460
        %v462 = vpop.f32.mrb[0].mxu0
        %463 = vmatprep.mubr.f32.mxu0 0.0
        %464 = vmatmul.mubr.f32.gmra.mrb[0].mxu0 %v392
        %v465 = vpop.f32.mrb[0].mxu0
        %v466 = vadd.f32 0.0, %v465
        %v467 = vpop.f32.mrb[0].mxu0
        %468 = vdwg.mxu0
        %v470 = vsel %vm387, %v461, 0
        %v473 = vsel %vm387, %v466, 0
        %475 = vmatprep.subr.mxu0 0.0
        %476 = vmatpush1.msra.mxu0 %v376
        %477 = vmatprep.subr.mxu0 0.0
        %478 = vmatpush1.msra.mxu0 0.0
        %479 = vmatprep.subr.mxu0 0.0
        %480 = vmatpush1.msra.mxu0 0.0
        %481 = vmatprep.subr.mxu0 0.0
        %482 = vmatpush1.msra.mxu0 0.0
        %483 = vmatprep.subr.mxu0 0.0
        %484 = vmatpush1.msra.mxu0 0.0
        %485 = vmatprep.subr.mxu0 0.0
        %486 = vmatpush1.msra.mxu0 0.0
        %487 = vmatprep.subr.mxu0 0.0
        %488 = vmatpush1.msra.mxu0 0.0
        %489 = vmatprep.subr.mxu0 0.0
        %490 = vmatpush1.msra.mxu0 0.0
        %491 = vmatprep.subr.mxu0 0.0
        %492 = vmatpush1.msra.mxu0 0.0
        %493 = vmatprep.subr.mxu0 0.0
        %494 = vmatpush1.msra.mxu0 0.0
        %495 = vmatprep.subr.mxu0 0.0
        %496 = vmatpush1.msra.mxu0 0.0
        %497 = vmatprep.subr.mxu0 0.0
        %498 = vmatpush1.msra.mxu0 0.0
        %499 = vmatprep.subr.mxu0 0.0
        %500 = vmatpush1.msra.mxu0 0.0
        %501 = vmatprep.subr.mxu0 0.0
        %502 = vmatpush1.msra.mxu0 0.0
        %503 = vmatprep.subr.mxu0 0.0
        %504 = vmatpush1.msra.mxu0 0.0
        %505 = vmatprep.subr.mxu0 0.0
        %506 = vmatpush1.msra.mxu0 0.0
        %507 = vmatprep.subr.mxu0 0.0
        %508 = vmatpush1.msra.mxu0 0.0
        %509 = vmatprep.subr.mxu0 0.0
        %510 = vmatpush1.msra.mxu0 0.0
        %511 = vmatprep.subr.mxu0 0.0
        %512 = vmatpush1.msra.mxu0 0.0
        %513 = vmatprep.subr.mxu0 0.0
        %514 = vmatpush1.msra.mxu0 0.0
        %515 = vmatprep.subr.mxu0 0.0
        %516 = vmatpush1.msra.mxu0 0.0
        %517 = vmatprep.subr.mxu0 0.0
        %518 = vmatpush1.msra.mxu0 0.0
        %519 = vmatprep.subr.mxu0 0.0
        %520 = vmatpush1.msra.mxu0 0.0
        %521 = vmatprep.subr.mxu0 0.0
        %522 = vmatpush1.msra.mxu0 0.0
        %523 = vmatprep.subr.mxu0 0.0
        %524 = vmatpush1.msra.mxu0 0.0
        %525 = vmatprep.subr.mxu0 0.0
        %526 = vmatpush1.msra.mxu0 0.0
        %527 = vmatprep.subr.mxu0 0.0
        %528 = vmatpush1.msra.mxu0 0.0
        %529 = vmatprep.subr.mxu0 0.0
        %530 = vmatpush1.msra.mxu0 0.0
        %531 = vmatprep.subr.mxu0 0.0
        %532 = vmatpush1.msra.mxu0 0.0
        %533 = vmatprep.subr.mxu0 0.0
        %534 = vmatpush1.msra.mxu0 0.0
        %535 = vmatprep.subr.mxu0 0.0
        %536 = vmatpush1.msra.mxu0 0.0
        %537 = vmatprep.subr.mxu0 0.0
        %538 = vmatpush1.msra.mxu0 0.0
        %539 = vmatprep.mubr.f32.mxu0 0.0
        %540 = vmatmul.mubr.f32.gmra.mrb[0].mxu0 %v470
        %v541 = vpop.f32.mrb[0].mxu0
        %v542 = vadd.f32 0.0, %v541
        %v543 = vpop.f32.mrb[0].mxu0
        %544 = vmatprep.mubr.f32.mxu0 0.0
        %545 = vmatmul.mubr.f32.gmra.mrb[0].mxu0 %v473
        %v546 = vpop.f32.mrb[0].mxu0
        %v547 = vadd.f32 0.0, %v546
        %v548 = vpop.f32.mrb[0].mxu0
        %549 = vdwg.mxu0
        %vm550 = vcmask 130048
        %551 = vst.msk [vmem:[%s363] sm:$0xff] %vm550, %v542
        %552 = vst.msk [vmem:[%s363 + $0x8] sm:$0xff] %vm550, %v547
        %553 = vmatprep.subr.mxu0 0.0
        %554 = vmatpush1.msra.mxu0 %v386
        %555 = vmatprep.subr.mxu0 0.0
        %556 = vmatpush1.msra.mxu0 0.0
        %557 = vmatprep.subr.mxu0 0.0
        %558 = vmatpush1.msra.mxu0 0.0
        %559 = vmatprep.subr.mxu0 0.0
        %560 = vmatpush1.msra.mxu0 0.0
        %561 = vmatprep.subr.mxu0 0.0
        %562 = vmatpush1.msra.mxu0 0.0
        %563 = vmatprep.subr.mxu0 0.0
        %564 = vmatpush1.msra.mxu0 0.0
        %565 = vmatprep.subr.mxu0 0.0
        %566 = vmatpush1.msra.mxu0 0.0
        %567 = vmatprep.subr.mxu0 0.0
        %568 = vmatpush1.msra.mxu0 0.0
        %569 = vmatprep.subr.mxu0 0.0
        %570 = vmatpush1.msra.mxu0 0.0
        %571 = vmatprep.subr.mxu0 0.0
        %572 = vmatpush1.msra.mxu0 0.0
        %573 = vmatprep.subr.mxu0 0.0
        %574 = vmatpush1.msra.mxu0 0.0
        %575 = vmatprep.subr.mxu0 0.0
        %576 = vmatpush1.msra.mxu0 0.0
        %577 = vmatprep.subr.mxu0 0.0
        %578 = vmatpush1.msra.mxu0 0.0
        %579 = vmatprep.subr.mxu0 0.0
        %580 = vmatpush1.msra.mxu0 0.0
        %581 = vmatprep.subr.mxu0 0.0
        %582 = vmatpush1.msra.mxu0 0.0
        %583 = vmatprep.subr.mxu0 0.0
        %584 = vmatpush1.msra.mxu0 0.0
        %585 = vmatprep.subr.mxu0 0.0
        %586 = vmatpush1.msra.mxu0 0.0
        %587 = vmatprep.subr.mxu0 0.0
        %588 = vmatpush1.msra.mxu0 0.0
        %589 = vmatprep.subr.mxu0 0.0
        %590 = vmatpush1.msra.mxu0 0.0
        %591 = vmatprep.subr.mxu0 0.0
        %592 = vmatpush1.msra.mxu0 0.0
        %593 = vmatprep.subr.mxu0 0.0
        %594 = vmatpush1.msra.mxu0 0.0
        %595 = vmatprep.subr.mxu0 0.0
        %596 = vmatpush1.msra.mxu0 0.0
        %597 = vmatprep.subr.mxu0 0.0
        %598 = vmatpush1.msra.mxu0 0.0
        %599 = vmatprep.subr.mxu0 0.0
        %600 = vmatpush1.msra.mxu0 0.0
        %601 = vmatprep.subr.mxu0 0.0
        %602 = vmatpush1.msra.mxu0 0.0
        %603 = vmatprep.subr.mxu0 0.0
        %604 = vmatpush1.msra.mxu0 0.0
        %605 = vmatprep.subr.mxu0 0.0
        %606 = vmatpush1.msra.mxu0 0.0
        %607 = vmatprep.subr.mxu0 0.0
        %608 = vmatpush1.msra.mxu0 0.0
        %609 = vmatprep.subr.mxu0 0.0
        %610 = vmatpush1.msra.mxu0 0.0
        %611 = vmatprep.subr.mxu0 0.0
        %612 = vmatpush1.msra.mxu0 0.0
        %613 = vmatprep.subr.mxu0 0.0
        %614 = vmatpush1.msra.mxu0 0.0
        %615 = vmatprep.subr.mxu0 0.0
        %616 = vmatpush1.msra.mxu0 0.0
        %617 = vmatprep.mubr.f32.mxu0 0.0
        %618 = vmatmul.mubr.f32.gmra.mrb[0].mxu0 %v389
        %v619 = vpop.f32.mrb[0].mxu0
        %v620 = vadd.f32 0.0, %v619
        %v621 = vpop.f32.mrb[0].mxu0
        %622 = vmatprep.mubr.f32.mxu0 0.0
        %623 = vmatmul.mubr.f32.gmra.mrb[0].mxu0 %v392
        %v624 = vpop.f32.mrb[0].mxu0
        %v625 = vadd.f32 0.0, %v624
        %v626 = vpop.f32.mrb[0].mxu0
        %627 = vdwg.mxu0
        %v629 = vsel %vm387, %v620, 0
        %v632 = vsel %vm387, %v625, 0
        %634 = vmatprep.subr.mxu0 0.0
        %635 = vmatpush1.msra.mxu0 %v376
        %636 = vmatprep.subr.mxu0 0.0
        %637 = vmatpush1.msra.mxu0 0.0
        %638 = vmatprep.subr.mxu0 0.0
        %639 = vmatpush1.msra.mxu0 0.0
        %640 = vmatprep.subr.mxu0 0.0
        %641 = vmatpush1.msra.mxu0 0.0
        %642 = vmatprep.subr.mxu0 0.0
        %643 = vmatpush1.msra.mxu0 0.0
        %644 = vmatprep.subr.mxu0 0.0
        %645 = vmatpush1.msra.mxu0 0.0
        %646 = vmatprep.subr.mxu0 0.0
        %647 = vmatpush1.msra.mxu0 0.0
        %648 = vmatprep.subr.mxu0 0.0
        %649 = vmatpush1.msra.mxu0 0.0
        %650 = vmatprep.subr.mxu0 0.0
        %651 = vmatpush1.msra.mxu0 0.0
        %652 = vmatprep.subr.mxu0 0.0
        %653 = vmatpush1.msra.mxu0 0.0
        %654 = vmatprep.subr.mxu0 0.0
        %655 = vmatpush1.msra.mxu0 0.0
        %656 = vmatprep.subr.mxu0 0.0
        %657 = vmatpush1.msra.mxu0 0.0
        %658 = vmatprep.subr.mxu0 0.0
        %659 = vmatpush1.msra.mxu0 0.0
        %660 = vmatprep.subr.mxu0 0.0
        %661 = vmatpush1.msra.mxu0 0.0
        %662 = vmatprep.subr.mxu0 0.0
        %663 = vmatpush1.msra.mxu0 0.0
        %664 = vmatprep.subr.mxu0 0.0
        %665 = vmatpush1.msra.mxu0 0.0
        %666 = vmatprep.subr.mxu0 0.0
        %667 = vmatpush1.msra.mxu0 0.0
        %668 = vmatprep.subr.mxu0 0.0
        %669 = vmatpush1.msra.mxu0 0.0
        %670 = vmatprep.subr.mxu0 0.0
        %671 = vmatpush1.msra.mxu0 0.0
        %672 = vmatprep.subr.mxu0 0.0
        %673 = vmatpush1.msra.mxu0 0.0
        %674 = vmatprep.subr.mxu0 0.0
        %675 = vmatpush1.msra.mxu0 0.0
        %676 = vmatprep.subr.mxu0 0.0
        %677 = vmatpush1.msra.mxu0 0.0
        %678 = vmatprep.subr.mxu0 0.0
        %679 = vmatpush1.msra.mxu0 0.0
        %680 = vmatprep.subr.mxu0 0.0
        %681 = vmatpush1.msra.mxu0 0.0
        %682 = vmatprep.subr.mxu0 0.0
        %683 = vmatpush1.msra.mxu0 0.0
        %684 = vmatprep.subr.mxu0 0.0
        %685 = vmatpush1.msra.mxu0 0.0
        %686 = vmatprep.subr.mxu0 0.0
        %687 = vmatpush1.msra.mxu0 0.0
        %688 = vmatprep.subr.mxu0 0.0
        %689 = vmatpush1.msra.mxu0 0.0
        %690 = vmatprep.subr.mxu0 0.0
        %691 = vmatpush1.msra.mxu0 0.0
        %692 = vmatprep.subr.mxu0 0.0
        %693 = vmatpush1.msra.mxu0 0.0
        %694 = vmatprep.subr.mxu0 0.0
        %695 = vmatpush1.msra.mxu0 0.0
        %696 = vmatprep.subr.mxu0 0.0
        %697 = vmatpush1.msra.mxu0 0.0
        %698 = vmatprep.mubr.f32.mxu0 0.0
        %699 = vmatmul.mubr.f32.gmra.mrb[0].mxu0 %v629
        %v700 = vpop.f32.mrb[0].mxu0
        %v701 = vadd.f32 0.0, %v700
        %v702 = vpop.f32.mrb[0].mxu0
        %703 = vmatprep.mubr.f32.mxu0 0.0
        %704 = vmatmul.mubr.f32.gmra.mrb[0].mxu0 %v632
        %v705 = vpop.f32.mrb[0].mxu0
        %v706 = vadd.f32 0.0, %v705
        %v707 = vpop.f32.mrb[0].mxu0
        %708 = vdwg.mxu0
        %s709 = scalar_lea.vmem %s363, 16 [#allocation8]
        %710 = vst.msk [vmem:[%s709] sm:$0xff] %vm550, %v701
        %711 = vst.msk [vmem:[%s709 + $0x8] sm:$0xff] %vm550, %v706
        %v712 = vld [vmem:[%s379] sm:$0xff]
        %v713 = vld [vmem:[%s309] sm:$0xff]
        %s714 = scalar_lea.vmem %s309, 16 [#allocation2]
        %v715 = vld [vmem:[%s714] sm:$0xff]
        %v716 = vsub.f32 %v713, %v712
        %v717 = vmul.f32 %v716, 0.25
        %v718 = vadd.f32 %v712, %v717
        %v719 = vsub.f32 %v715, %v712
        %v720 = vmul.f32 %v719, 0.25
        %v721 = vadd.f32 %v712, %v720
        %722 = vmatprep.subr.mxu0 0.0
        %723 = vmatpush1.msra.mxu0 %v718
        %724 = vmatprep.subr.mxu0 0.0
        %725 = vmatpush1.msra.mxu0 0.0
        %726 = vmatprep.subr.mxu0 0.0
        %727 = vmatpush1.msra.mxu0 0.0
        %728 = vmatprep.subr.mxu0 0.0
        %729 = vmatpush1.msra.mxu0 0.0
        %730 = vmatprep.subr.mxu0 0.0
        %731 = vmatpush1.msra.mxu0 0.0
        %732 = vmatprep.subr.mxu0 0.0
        %733 = vmatpush1.msra.mxu0 0.0
        %734 = vmatprep.subr.mxu0 0.0
        %735 = vmatpush1.msra.mxu0 0.0
        %736 = vmatprep.subr.mxu0 0.0
        %737 = vmatpush1.msra.mxu0 0.0
        %738 = vmatprep.subr.mxu0 0.0
        %739 = vmatpush1.msra.mxu0 0.0
        %740 = vmatprep.subr.mxu0 0.0
        %741 = vmatpush1.msra.mxu0 0.0
        %742 = vmatprep.subr.mxu0 0.0
        %743 = vmatpush1.msra.mxu0 0.0
        %744 = vmatprep.subr.mxu0 0.0
        %745 = vmatpush1.msra.mxu0 0.0
        %746 = vmatprep.subr.mxu0 0.0
        %747 = vmatpush1.msra.mxu0 0.0
        %748 = vmatprep.subr.mxu0 0.0
        %749 = vmatpush1.msra.mxu0 0.0
        %750 = vmatprep.subr.mxu0 0.0
        %751 = vmatpush1.msra.mxu0 0.0
        %752 = vmatprep.subr.mxu0 0.0
        %753 = vmatpush1.msra.mxu0 0.0
        %754 = vmatprep.subr.mxu0 0.0
        %755 = vmatpush1.msra.mxu0 0.0
        %756 = vmatprep.subr.mxu0 0.0
        %757 = vmatpush1.msra.mxu0 0.0
        %758 = vmatprep.subr.mxu0 0.0
        %759 = vmatpush1.msra.mxu0 0.0
        %760 = vmatprep.subr.mxu0 0.0
        %761 = vmatpush1.msra.mxu0 0.0
        %762 = vmatprep.subr.mxu0 0.0
        %763 = vmatpush1.msra.mxu0 0.0
        %764 = vmatprep.subr.mxu0 0.0
        %765 = vmatpush1.msra.mxu0 0.0
        %766 = vmatprep.subr.mxu0 0.0
        %767 = vmatpush1.msra.mxu0 0.0
        %768 = vmatprep.subr.mxu0 0.0
        %769 = vmatpush1.msra.mxu0 0.0
        %770 = vmatprep.subr.mxu0 0.0
        %771 = vmatpush1.msra.mxu0 0.0
        %772 = vmatprep.subr.mxu0 0.0
        %773 = vmatpush1.msra.mxu0 0.0
        %774 = vmatprep.subr.mxu0 0.0
        %775 = vmatpush1.msra.mxu0 0.0
        %776 = vmatprep.subr.mxu0 0.0
        %777 = vmatpush1.msra.mxu0 0.0
        %778 = vmatprep.subr.mxu0 0.0
        %779 = vmatpush1.msra.mxu0 0.0
        %780 = vmatprep.subr.mxu0 0.0
        %781 = vmatpush1.msra.mxu0 0.0
        %782 = vmatprep.subr.mxu0 0.0
        %783 = vmatpush1.msra.mxu0 0.0
        %784 = vmatprep.subr.mxu0 0.0
        %785 = vmatpush1.msra.mxu0 0.0
        %786 = vmatprep.mubr.f32.mxu0 0.0
        %787 = vmatmul.mubr.f32.gmra.mrb[0].mxu0 %v389
        %v788 = vpop.f32.mrb[0].mxu0
        %v789 = vadd.f32 0.0, %v788
        %v790 = vpop.f32.mrb[0].mxu0
        %791 = vmatprep.mubr.f32.mxu0 0.0
        %792 = vmatmul.mubr.f32.gmra.mrb[0].mxu0 %v392
        %v793 = vpop.f32.mrb[0].mxu0
        %v794 = vadd.f32 0.0, %v793
        %v795 = vpop.f32.mrb[0].mxu0
        %796 = vdwg.mxu0
        %v798 = vsel %vm387, %v789, 0
        %v801 = vsel %vm387, %v794, 0
        %803 = vmatprep.subr.mxu0 0.0
        %804 = vmatpush1.msra.mxu0 %v376
        %805 = vmatprep.subr.mxu0 0.0
        %806 = vmatpush1.msra.mxu0 0.0
        %807 = vmatprep.subr.mxu0 0.0
        %808 = vmatpush1.msra.mxu0 0.0
        %809 = vmatprep.subr.mxu0 0.0
        %810 = vmatpush1.msra.mxu0 0.0
        %811 = vmatprep.subr.mxu0 0.0
        %812 = vmatpush1.msra.mxu0 0.0
        %813 = vmatprep.subr.mxu0 0.0
        %814 = vmatpush1.msra.mxu0 0.0
        %815 = vmatprep.subr.mxu0 0.0
        %816 = vmatpush1.msra.mxu0 0.0
        %817 = vmatprep.subr.mxu0 0.0
        %818 = vmatpush1.msra.mxu0 0.0
        %819 = vmatprep.subr.mxu0 0.0
        %820 = vmatpush1.msra.mxu0 0.0
        %821 = vmatprep.subr.mxu0 0.0
        %822 = vmatpush1.msra.mxu0 0.0
        %823 = vmatprep.subr.mxu0 0.0
        %824 = vmatpush1.msra.mxu0 0.0
        %825 = vmatprep.subr.mxu0 0.0
        %826 = vmatpush1.msra.mxu0 0.0
        %827 = vmatprep.subr.mxu0 0.0
        %828 = vmatpush1.msra.mxu0 0.0
        %829 = vmatprep.subr.mxu0 0.0
        %830 = vmatpush1.msra.mxu0 0.0
        %831 = vmatprep.subr.mxu0 0.0
        %832 = vmatpush1.msra.mxu0 0.0
        %833 = vmatprep.subr.mxu0 0.0
        %834 = vmatpush1.msra.mxu0 0.0
        %835 = vmatprep.subr.mxu0 0.0
        %836 = vmatpush1.msra.mxu0 0.0
        %837 = vmatprep.subr.mxu0 0.0
        %838 = vmatpush1.msra.mxu0 0.0
        %839 = vmatprep.subr.mxu0 0.0
        %840 = vmatpush1.msra.mxu0 0.0
        %841 = vmatprep.subr.mxu0 0.0
        %842 = vmatpush1.msra.mxu0 0.0
        %843 = vmatprep.subr.mxu0 0.0
        %844 = vmatpush1.msra.mxu0 0.0
        %845 = vmatprep.subr.mxu0 0.0
        %846 = vmatpush1.msra.mxu0 0.0
        %847 = vmatprep.subr.mxu0 0.0
        %848 = vmatpush1.msra.mxu0 0.0
        %849 = vmatprep.subr.mxu0 0.0
        %850 = vmatpush1.msra.mxu0 0.0
        %851 = vmatprep.subr.mxu0 0.0
        %852 = vmatpush1.msra.mxu0 0.0
        %853 = vmatprep.subr.mxu0 0.0
        %854 = vmatpush1.msra.mxu0 0.0
        %855 = vmatprep.subr.mxu0 0.0
        %856 = vmatpush1.msra.mxu0 0.0
        %857 = vmatprep.subr.mxu0 0.0
        %858 = vmatpush1.msra.mxu0 0.0
        %859 = vmatprep.subr.mxu0 0.0
        %860 = vmatpush1.msra.mxu0 0.0
        %861 = vmatprep.subr.mxu0 0.0
        %862 = vmatpush1.msra.mxu0 0.0
        %863 = vmatprep.subr.mxu0 0.0
        %864 = vmatpush1.msra.mxu0 0.0
        %865 = vmatprep.subr.mxu0 0.0
        %866 = vmatpush1.msra.mxu0 0.0
        %867 = vmatprep.mubr.f32.mxu0 0.0
        %868 = vmatmul.mubr.f32.gmra.mrb[0].mxu0 %v798
        %v869 = vpop.f32.mrb[0].mxu0
        %v870 = vadd.f32 0.0, %v869
        %v871 = vpop.f32.mrb[0].mxu0
        %872 = vmatprep.mubr.f32.mxu0 0.0
        %873 = vmatmul.mubr.f32.gmra.mrb[0].mxu0 %v801
        %v874 = vpop.f32.mrb[0].mxu0
        %v875 = vadd.f32 0.0, %v874
        %v876 = vpop.f32.mrb[0].mxu0
        %877 = vdwg.mxu0
        %s878 = scalar_lea.vmem %s363, 32 [#allocation8]
        %879 = vst.msk [vmem:[%s878] sm:$0xff] %vm550, %v870
        %880 = vst.msk [vmem:[%s878 + $0x8] sm:$0xff] %vm550, %v875
        %881 = vmatprep.subr.mxu0 0.0
        %882 = vmatpush1.msra.mxu0 %v721
        %883 = vmatprep.subr.mxu0 0.0
        %884 = vmatpush1.msra.mxu0 0.0
        %885 = vmatprep.subr.mxu0 0.0
        %886 = vmatpush1.msra.mxu0 0.0
        %887 = vmatprep.subr.mxu0 0.0
        %888 = vmatpush1.msra.mxu0 0.0
        %889 = vmatprep.subr.mxu0 0.0
        %890 = vmatpush1.msra.mxu0 0.0
        %891 = vmatprep.subr.mxu0 0.0
        %892 = vmatpush1.msra.mxu0 0.0
        %893 = vmatprep.subr.mxu0 0.0
        %894 = vmatpush1.msra.mxu0 0.0
        %895 = vmatprep.subr.mxu0 0.0
        %896 = vmatpush1.msra.mxu0 0.0
        %897 = vmatprep.subr.mxu0 0.0
        %898 = vmatpush1.msra.mxu0 0.0
        %899 = vmatprep.subr.mxu0 0.0
        %900 = vmatpush1.msra.mxu0 0.0
        %901 = vmatprep.subr.mxu0 0.0
        %902 = vmatpush1.msra.mxu0 0.0
        %903 = vmatprep.subr.mxu0 0.0
        %904 = vmatpush1.msra.mxu0 0.0
        %905 = vmatprep.subr.mxu0 0.0
        %906 = vmatpush1.msra.mxu0 0.0
        %907 = vmatprep.subr.mxu0 0.0
        %908 = vmatpush1.msra.mxu0 0.0
        %909 = vmatprep.subr.mxu0 0.0
        %910 = vmatpush1.msra.mxu0 0.0
        %911 = vmatprep.subr.mxu0 0.0
        %912 = vmatpush1.msra.mxu0 0.0
        %913 = vmatprep.subr.mxu0 0.0
        %914 = vmatpush1.msra.mxu0 0.0
        %915 = vmatprep.subr.mxu0 0.0
        %916 = vmatpush1.msra.mxu0 0.0
        %917 = vmatprep.subr.mxu0 0.0
        %918 = vmatpush1.msra.mxu0 0.0
        %919 = vmatprep.subr.mxu0 0.0
        %920 = vmatpush1.msra.mxu0 0.0
        %921 = vmatprep.subr.mxu0 0.0
        %922 = vmatpush1.msra.mxu0 0.0
        %923 = vmatprep.subr.mxu0 0.0
        %924 = vmatpush1.msra.mxu0 0.0
        %925 = vmatprep.subr.mxu0 0.0
        %926 = vmatpush1.msra.mxu0 0.0
        %927 = vmatprep.subr.mxu0 0.0
        %928 = vmatpush1.msra.mxu0 0.0
        %929 = vmatprep.subr.mxu0 0.0
        %930 = vmatpush1.msra.mxu0 0.0
        %931 = vmatprep.subr.mxu0 0.0
        %932 = vmatpush1.msra.mxu0 0.0
        %933 = vmatprep.subr.mxu0 0.0
        %934 = vmatpush1.msra.mxu0 0.0
        %935 = vmatprep.subr.mxu0 0.0
        %936 = vmatpush1.msra.mxu0 0.0
        %937 = vmatprep.subr.mxu0 0.0
        %938 = vmatpush1.msra.mxu0 0.0
        %939 = vmatprep.subr.mxu0 0.0
        %940 = vmatpush1.msra.mxu0 0.0
        %941 = vmatprep.subr.mxu0 0.0
        %942 = vmatpush1.msra.mxu0 0.0
        %943 = vmatprep.subr.mxu0 0.0
        %944 = vmatpush1.msra.mxu0 0.0
        %945 = vmatprep.mubr.f32.mxu0 0.0
        %946 = vmatmul.mubr.f32.gmra.mrb[0].mxu0 %v389
        %v947 = vpop.f32.mrb[0].mxu0
        %v948 = vadd.f32 0.0, %v947
        %v949 = vpop.f32.mrb[0].mxu0
        %950 = vmatprep.mubr.f32.mxu0 0.0
        %951 = vmatmul.mubr.f32.gmra.mrb[0].mxu0 %v392
        %v952 = vpop.f32.mrb[0].mxu0
        %v953 = vadd.f32 0.0, %v952
        %v954 = vpop.f32.mrb[0].mxu0
        %955 = vdwg.mxu0
        %v957 = vsel %vm387, %v948, 0
        %v960 = vsel %vm387, %v953, 0
        %962 = vmatprep.subr.mxu0 0.0
        %963 = vmatpush1.msra.mxu0 %v376
        %964 = vmatprep.subr.mxu0 0.0
        %965 = vmatpush1.msra.mxu0 0.0
        %966 = vmatprep.subr.mxu0 0.0
        %967 = vmatpush1.msra.mxu0 0.0
        %968 = vmatprep.subr.mxu0 0.0
        %969 = vmatpush1.msra.mxu0 0.0
        %970 = vmatprep.subr.mxu0 0.0
        %971 = vmatpush1.msra.mxu0 0.0
        %972 = vmatprep.subr.mxu0 0.0
        %973 = vmatpush1.msra.mxu0 0.0
        %974 = vmatprep.subr.mxu0 0.0
        %975 = vmatpush1.msra.mxu0 0.0
        %976 = vmatprep.subr.mxu0 0.0
        %977 = vmatpush1.msra.mxu0 0.0
        %978 = vmatprep.subr.mxu0 0.0
        %979 = vmatpush1.msra.mxu0 0.0
        %980 = vmatprep.subr.mxu0 0.0
        %981 = vmatpush1.msra.mxu0 0.0
        %982 = vmatprep.subr.mxu0 0.0
        %983 = vmatpush1.msra.mxu0 0.0
        %984 = vmatprep.subr.mxu0 0.0
        %985 = vmatpush1.msra.mxu0 0.0
        %986 = vmatprep.subr.mxu0 0.0
        %987 = vmatpush1.msra.mxu0 0.0
        %988 = vmatprep.subr.mxu0 0.0
        %989 = vmatpush1.msra.mxu0 0.0
        %990 = vmatprep.subr.mxu0 0.0
        %991 = vmatpush1.msra.mxu0 0.0
        %992 = vmatprep.subr.mxu0 0.0
        %993 = vmatpush1.msra.mxu0 0.0
        %994 = vmatprep.subr.mxu0 0.0
        %995 = vmatpush1.msra.mxu0 0.0
        %996 = vmatprep.subr.mxu0 0.0
        %997 = vmatpush1.msra.mxu0 0.0
        %998 = vmatprep.subr.mxu0 0.0
        %999 = vmatpush1.msra.mxu0 0.0
        %1000 = vmatprep.subr.mxu0 0.0
        %1001 = vmatpush1.msra.mxu0 0.0
        %1002 = vmatprep.subr.mxu0 0.0
        %1003 = vmatpush1.msra.mxu0 0.0
        %1004 = vmatprep.subr.mxu0 0.0
        %1005 = vmatpush1.msra.mxu0 0.0
        %1006 = vmatprep.subr.mxu0 0.0
        %1007 = vmatpush1.msra.mxu0 0.0
        %1008 = vmatprep.subr.mxu0 0.0
        %1009 = vmatpush1.msra.mxu0 0.0
        %1010 = vmatprep.subr.mxu0 0.0
        %1011 = vmatpush1.msra.mxu0 0.0
        %1012 = vmatprep.subr.mxu0 0.0
        %1013 = vmatpush1.msra.mxu0 0.0
        %1014 = vmatprep.subr.mxu0 0.0
        %1015 = vmatpush1.msra.mxu0 0.0
        %1016 = vmatprep.subr.mxu0 0.0
        %1017 = vmatpush1.msra.mxu0 0.0
        %1018 = vmatprep.subr.mxu0 0.0
        %1019 = vmatpush1.msra.mxu0 0.0
        %1020 = vmatprep.subr.mxu0 0.0
        %1021 = vmatpush1.msra.mxu0 0.0
        %1022 = vmatprep.subr.mxu0 0.0
        %1023 = vmatpush1.msra.mxu0 0.0
        %1024 = vmatprep.subr.mxu0 0.0
        %1025 = vmatpush1.msra.mxu0 0.0
        %1026 = vmatprep.mubr.f32.mxu0 0.0
        %1027 = vmatmul.mubr.f32.gmra.mrb[0].mxu0 %v957
        %v1028 = vpop.f32.mrb[0].mxu0
        %v1029 = vadd.f32 0.0, %v1028
        %v1030 = vpop.f32.mrb[0].mxu0
        %1031 = vmatprep.mubr.f32.mxu0 0.0
        %1032 = vmatmul.mubr.f32.gmra.mrb[0].mxu0 %v960
        %v1033 = vpop.f32.mrb[0].mxu0
        %v1034 = vadd.f32 0.0, %v1033
        %v1035 = vpop.f32.mrb[0].mxu0
        %1036 = vdwg.mxu0
        %s1037 = scalar_lea.vmem %s363, 48 [#allocation8]
        %1038 = vst.msk [vmem:[%s1037] sm:$0xff] %vm550, %v1029
        %1039 = vst.msk [vmem:[%s1037 + $0x8] sm:$0xff] %vm550, %v1034
        %v1040 = vld [vmem:[%s714] sm:$0xff]
        %v1041 = vld [vmem:[%s379] sm:$0xff]
        %s1042 = scalar_lea.vmem %s309, 24 [#allocation2]
        %v1043 = vld [vmem:[%s1042] sm:$0xff]
        %v1044 = vsub.f32 %v1041, %v1040
        %v1045 = vmul.f32 %v1044, 0.25
        %v1046 = vadd.f32 %v1040, %v1045
        %v1047 = vsub.f32 %v1043, %v1040
        %v1048 = vmul.f32 %v1047, 0.25
        %v1049 = vadd.f32 %v1040, %v1048
        %1050 = vmatprep.subr.mxu0 0.0
        %1051 = vmatpush1.msra.mxu0 %v1046
        %1052 = vmatprep.subr.mxu0 0.0
        %1053 = vmatpush1.msra.mxu0 0.0
        %1054 = vmatprep.subr.mxu0 0.0
        %1055 = vmatpush1.msra.mxu0 0.0
        %1056 = vmatprep.subr.mxu0 0.0
        %1057 = vmatpush1.msra.mxu0 0.0
        %1058 = vmatprep.subr.mxu0 0.0
        %1059 = vmatpush1.msra.mxu0 0.0
        %1060 = vmatprep.subr.mxu0 0.0
        %1061 = vmatpush1.msra.mxu0 0.0
        %1062 = vmatprep.subr.mxu0 0.0
        %1063 = vmatpush1.msra.mxu0 0.0
        %1064 = vmatprep.subr.mxu0 0.0
        %1065 = vmatpush1.msra.mxu0 0.0
        %1066 = vmatprep.subr.mxu0 0.0
        %1067 = vmatpush1.msra.mxu0 0.0
        %1068 = vmatprep.subr.mxu0 0.0
        %1069 = vmatpush1.msra.mxu0 0.0
        %1070 = vmatprep.subr.mxu0 0.0
        %1071 = vmatpush1.msra.mxu0 0.0
        %1072 = vmatprep.subr.mxu0 0.0
        %1073 = vmatpush1.msra.mxu0 0.0
        %1074 = vmatprep.subr.mxu0 0.0
        %1075 = vmatpush1.msra.mxu0 0.0
        %1076 = vmatprep.subr.mxu0 0.0
        %1077 = vmatpush1.msra.mxu0 0.0
        %1078 = vmatprep.subr.mxu0 0.0
        %1079 = vmatpush1.msra.mxu0 0.0
        %1080 = vmatprep.subr.mxu0 0.0
        %1081 = vmatpush1.msra.mxu0 0.0
        %1082 = vmatprep.subr.mxu0 0.0
        %1083 = vmatpush1.msra.mxu0 0.0
        %1084 = vmatprep.subr.mxu0 0.0
        %1085 = vmatpush1.msra.mxu0 0.0
        %1086 = vmatprep.subr.mxu0 0.0
        %1087 = vmatpush1.msra.mxu0 0.0
        %1088 = vmatprep.subr.mxu0 0.0
        %1089 = vmatpush1.msra.mxu0 0.0
        %1090 = vmatprep.subr.mxu0 0.0
        %1091 = vmatpush1.msra.mxu0 0.0
        %1092 = vmatprep.subr.mxu0 0.0
        %1093 = vmatpush1.msra.mxu0 0.0
        %1094 = vmatprep.subr.mxu0 0.0
        %1095 = vmatpush1.msra.mxu0 0.0
        %1096 = vmatprep.subr.mxu0 0.0
        %1097 = vmatpush1.msra.mxu0 0.0
        %1098 = vmatprep.subr.mxu0 0.0
        %1099 = vmatpush1.msra.mxu0 0.0
        %1100 = vmatprep.subr.mxu0 0.0
        %1101 = vmatpush1.msra.mxu0 0.0
        %1102 = vmatprep.subr.mxu0 0.0
        %1103 = vmatpush1.msra.mxu0 0.0
        %1104 = vmatprep.subr.mxu0 0.0
        %1105 = vmatpush1.msra.mxu0 0.0
        %1106 = vmatprep.subr.mxu0 0.0
        %1107 = vmatpush1.msra.mxu0 0.0
        %1108 = vmatprep.subr.mxu0 0.0
        %1109 = vmatpush1.msra.mxu0 0.0
        %1110 = vmatprep.subr.mxu0 0.0
        %1111 = vmatpush1.msra.mxu0 0.0
        %1112 = vmatprep.subr.mxu0 0.0
        %1113 = vmatpush1.msra.mxu0 0.0
        %1114 = vmatprep.mubr.f32.mxu0 0.0
        %1115 = vmatmul.mubr.f32.gmra.mrb[0].mxu0 %v389
        %v1116 = vpop.f32.mrb[0].mxu0
        %v1117 = vadd.f32 0.0, %v1116
        %v1118 = vpop.f32.mrb[0].mxu0
        %1119 = vmatprep.mubr.f32.mxu0 0.0
        %1120 = vmatmul.mubr.f32.gmra.mrb[0].mxu0 %v392
        %v1121 = vpop.f32.mrb[0].mxu0
        %v1122 = vadd.f32 0.0, %v1121
        %v1123 = vpop.f32.mrb[0].mxu0
        %1124 = vdwg.mxu0
        %v1126 = vsel %vm387, %v1117, 0
        %v1129 = vsel %vm387, %v1122, 0
        %1131 = vmatprep.subr.mxu0 0.0
        %1132 = vmatpush1.msra.mxu0 %v376
        %1133 = vmatprep.subr.mxu0 0.0
        %1134 = vmatpush1.msra.mxu0 0.0
        %1135 = vmatprep.subr.mxu0 0.0
        %1136 = vmatpush1.msra.mxu0 0.0
        %1137 = vmatprep.subr.mxu0 0.0
        %1138 = vmatpush1.msra.mxu0 0.0
        %1139 = vmatprep.subr.mxu0 0.0
        %1140 = vmatpush1.msra.mxu0 0.0
        %1141 = vmatprep.subr.mxu0 0.0
        %1142 = vmatpush1.msra.mxu0 0.0
        %1143 = vmatprep.subr.mxu0 0.0
        %1144 = vmatpush1.msra.mxu0 0.0
        %1145 = vmatprep.subr.mxu0 0.0
        %1146 = vmatpush1.msra.mxu0 0.0
        %1147 = vmatprep.subr.mxu0 0.0
        %1148 = vmatpush1.msra.mxu0 0.0
        %1149 = vmatprep.subr.mxu0 0.0
        %1150 = vmatpush1.msra.mxu0 0.0
        %1151 = vmatprep.subr.mxu0 0.0
        %1152 = vmatpush1.msra.mxu0 0.0
        %1153 = vmatprep.subr.mxu0 0.0
        %1154 = vmatpush1.msra.mxu0 0.0
        %1155 = vmatprep.subr.mxu0 0.0
        %1156 = vmatpush1.msra.mxu0 0.0
        %1157 = vmatprep.subr.mxu0 0.0
        %1158 = vmatpush1.msra.mxu0 0.0
        %1159 = vmatprep.subr.mxu0 0.0
        %1160 = vmatpush1.msra.mxu0 0.0
        %1161 = vmatprep.subr.mxu0 0.0
        %1162 = vmatpush1.msra.mxu0 0.0
        %1163 = vmatprep.subr.mxu0 0.0
        %1164 = vmatpush1.msra.mxu0 0.0
        %1165 = vmatprep.subr.mxu0 0.0
        %1166 = vmatpush1.msra.mxu0 0.0
        %1167 = vmatprep.subr.mxu0 0.0
        %1168 = vmatpush1.msra.mxu0 0.0
        %1169 = vmatprep.subr.mxu0 0.0
        %1170 = vmatpush1.msra.mxu0 0.0
        %1171 = vmatprep.subr.mxu0 0.0
        %1172 = vmatpush1.msra.mxu0 0.0
        %1173 = vmatprep.subr.mxu0 0.0
        %1174 = vmatpush1.msra.mxu0 0.0
        %1175 = vmatprep.subr.mxu0 0.0
        %1176 = vmatpush1.msra.mxu0 0.0
        %1177 = vmatprep.subr.mxu0 0.0
        %1178 = vmatpush1.msra.mxu0 0.0
        %1179 = vmatprep.subr.mxu0 0.0
        %1180 = vmatpush1.msra.mxu0 0.0
        %1181 = vmatprep.subr.mxu0 0.0
        %1182 = vmatpush1.msra.mxu0 0.0
        %1183 = vmatprep.subr.mxu0 0.0
        %1184 = vmatpush1.msra.mxu0 0.0
        %1185 = vmatprep.subr.mxu0 0.0
        %1186 = vmatpush1.msra.mxu0 0.0
        %1187 = vmatprep.subr.mxu0 0.0
        %1188 = vmatpush1.msra.mxu0 0.0
        %1189 = vmatprep.subr.mxu0 0.0
        %1190 = vmatpush1.msra.mxu0 0.0
        %1191 = vmatprep.subr.mxu0 0.0
        %1192 = vmatpush1.msra.mxu0 0.0
        %1193 = vmatprep.subr.mxu0 0.0
        %1194 = vmatpush1.msra.mxu0 0.0
        %1195 = vmatprep.mubr.f32.mxu0 0.0
        %1196 = vmatmul.mubr.f32.gmra.mrb[0].mxu0 %v1126
        %v1197 = vpop.f32.mrb[0].mxu0
        %v1198 = vadd.f32 0.0, %v1197
        %v1199 = vpop.f32.mrb[0].mxu0
        %1200 = vmatprep.mubr.f32.mxu0 0.0
        %1201 = vmatmul.mubr.f32.gmra.mrb[0].mxu0 %v1129
        %v1202 = vpop.f32.mrb[0].mxu0
        %v1203 = vadd.f32 0.0, %v1202
        %v1204 = vpop.f32.mrb[0].mxu0
        %1205 = vdwg.mxu0
        %s1206 = scalar_lea.vmem %s363, 64 [#allocation8]
        %1207 = vst.msk [vmem:[%s1206] sm:$0xff] %vm550, %v1198
        %1208 = vst.msk [vmem:[%s1206 + $0x8] sm:$0xff] %vm550, %v1203
        %1209 = vmatprep.subr.mxu0 0.0
        %1210 = vmatpush1.msra.mxu0 %v1049
        %1211 = vmatprep.subr.mxu0 0.0
        %1212 = vmatpush1.msra.mxu0 0.0
        %1213 = vmatprep.subr.mxu0 0.0
        %1214 = vmatpush1.msra.mxu0 0.0
        %1215 = vmatprep.subr.mxu0 0.0
        %1216 = vmatpush1.msra.mxu0 0.0
        %1217 = vmatprep.subr.mxu0 0.0
        %1218 = vmatpush1.msra.mxu0 0.0
        %1219 = vmatprep.subr.mxu0 0.0
        %1220 = vmatpush1.msra.mxu0 0.0
        %1221 = vmatprep.subr.mxu0 0.0
        %1222 = vmatpush1.msra.mxu0 0.0
        %1223 = vmatprep.subr.mxu0 0.0
        %1224 = vmatpush1.msra.mxu0 0.0
        %1225 = vmatprep.subr.mxu0 0.0
        %1226 = vmatpush1.msra.mxu0 0.0
        %1227 = vmatprep.subr.mxu0 0.0
        %1228 = vmatpush1.msra.mxu0 0.0
        %1229 = vmatprep.subr.mxu0 0.0
        %1230 = vmatpush1.msra.mxu0 0.0
        %1231 = vmatprep.subr.mxu0 0.0
        %1232 = vmatpush1.msra.mxu0 0.0
        %1233 = vmatprep.subr.mxu0 0.0
        %1234 = vmatpush1.msra.mxu0 0.0
        %1235 = vmatprep.subr.mxu0 0.0
        %1236 = vmatpush1.msra.mxu0 0.0
        %1237 = vmatprep.subr.mxu0 0.0
        %1238 = vmatpush1.msra.mxu0 0.0
        %1239 = vmatprep.subr.mxu0 0.0
        %1240 = vmatpush1.msra.mxu0 0.0
        %1241 = vmatprep.subr.mxu0 0.0
        %1242 = vmatpush1.msra.mxu0 0.0
        %1243 = vmatprep.subr.mxu0 0.0
        %1244 = vmatpush1.msra.mxu0 0.0
        %1245 = vmatprep.subr.mxu0 0.0
        %1246 = vmatpush1.msra.mxu0 0.0
        %1247 = vmatprep.subr.mxu0 0.0
        %1248 = vmatpush1.msra.mxu0 0.0
        %1249 = vmatprep.subr.mxu0 0.0
        %1250 = vmatpush1.msra.mxu0 0.0
        %1251 = vmatprep.subr.mxu0 0.0
        %1252 = vmatpush1.msra.mxu0 0.0
        %1253 = vmatprep.subr.mxu0 0.0
        %1254 = vmatpush1.msra.mxu0 0.0
        %1255 = vmatprep.subr.mxu0 0.0
        %1256 = vmatpush1.msra.mxu0 0.0
        %1257 = vmatprep.subr.mxu0 0.0
        %1258 = vmatpush1.msra.mxu0 0.0
        %1259 = vmatprep.subr.mxu0 0.0
        %1260 = vmatpush1.msra.mxu0 0.0
        %1261 = vmatprep.subr.mxu0 0.0
        %1262 = vmatpush1.msra.mxu0 0.0
        %1263 = vmatprep.subr.mxu0 0.0
        %1264 = vmatpush1.msra.mxu0 0.0
        %1265 = vmatprep.subr.mxu0 0.0
        %1266 = vmatpush1.msra.mxu0 0.0
        %1267 = vmatprep.subr.mxu0 0.0
        %1268 = vmatpush1.msra.mxu0 0.0
        %1269 = vmatprep.subr.mxu0 0.0
        %1270 = vmatpush1.msra.mxu0 0.0
        %1271 = vmatprep.subr.mxu0 0.0
        %1272 = vmatpush1.msra.mxu0 0.0
        %1273 = vmatprep.mubr.f32.mxu0 0.0
        %1274 = vmatmul.mubr.f32.gmra.mrb[0].mxu0 %v389
        %v1275 = vpop.f32.mrb[0].mxu0
        %v1276 = vadd.f32 0.0, %v1275
        %v1277 = vpop.f32.mrb[0].mxu0
        %1278 = vmatprep.mubr.f32.mxu0 0.0
        %1279 = vmatmul.mubr.f32.gmra.mrb[0].mxu0 %v392
        %v1280 = vpop.f32.mrb[0].mxu0
        %v1281 = vadd.f32 0.0, %v1280
        %v1282 = vpop.f32.mrb[0].mxu0
        %1283 = vdwg.mxu0
        %v1285 = vsel %vm387, %v1276, 0
        %v1288 = vsel %vm387, %v1281, 0
        %1290 = vmatprep.subr.mxu0 0.0
        %1291 = vmatpush1.msra.mxu0 %v376
        %1292 = vmatprep.subr.mxu0 0.0
        %1293 = vmatpush1.msra.mxu0 0.0
        %1294 = vmatprep.subr.mxu0 0.0
        %1295 = vmatpush1.msra.mxu0 0.0
        %1296 = vmatprep.subr.mxu0 0.0
        %1297 = vmatpush1.msra.mxu0 0.0
        %1298 = vmatprep.subr.mxu0 0.0
        %1299 = vmatpush1.msra.mxu0 0.0
        %1300 = vmatprep.subr.mxu0 0.0
        %1301 = vmatpush1.msra.mxu0 0.0
        %1302 = vmatprep.subr.mxu0 0.0
        %1303 = vmatpush1.msra.mxu0 0.0
        %1304 = vmatprep.subr.mxu0 0.0
        %1305 = vmatpush1.msra.mxu0 0.0
        %1306 = vmatprep.subr.mxu0 0.0
        %1307 = vmatpush1.msra.mxu0 0.0
        %1308 = vmatprep.subr.mxu0 0.0
        %1309 = vmatpush1.msra.mxu0 0.0
        %1310 = vmatprep.subr.mxu0 0.0
        %1311 = vmatpush1.msra.mxu0 0.0
        %1312 = vmatprep.subr.mxu0 0.0
        %1313 = vmatpush1.msra.mxu0 0.0
        %1314 = vmatprep.subr.mxu0 0.0
        %1315 = vmatpush1.msra.mxu0 0.0
        %1316 = vmatprep.subr.mxu0 0.0
        %1317 = vmatpush1.msra.mxu0 0.0
        %1318 = vmatprep.subr.mxu0 0.0
        %1319 = vmatpush1.msra.mxu0 0.0
        %1320 = vmatprep.subr.mxu0 0.0
        %1321 = vmatpush1.msra.mxu0 0.0
        %1322 = vmatprep.subr.mxu0 0.0
        %1323 = vmatpush1.msra.mxu0 0.0
        %1324 = vmatprep.subr.mxu0 0.0
        %1325 = vmatpush1.msra.mxu0 0.0
        %1326 = vmatprep.subr.mxu0 0.0
        %1327 = vmatpush1.msra.mxu0 0.0
        %1328 = vmatprep.subr.mxu0 0.0
        %1329 = vmatpush1.msra.mxu0 0.0
        %1330 = vmatprep.subr.mxu0 0.0
        %1331 = vmatpush1.msra.mxu0 0.0
        %1332 = vmatprep.subr.mxu0 0.0
        %1333 = vmatpush1.msra.mxu0 0.0
        %1334 = vmatprep.subr.mxu0 0.0
        %1335 = vmatpush1.msra.mxu0 0.0
        %1336 = vmatprep.subr.mxu0 0.0
        %1337 = vmatpush1.msra.mxu0 0.0
        %1338 = vmatprep.subr.mxu0 0.0
        %1339 = vmatpush1.msra.mxu0 0.0
        %1340 = vmatprep.subr.mxu0 0.0
        %1341 = vmatpush1.msra.mxu0 0.0
        %1342 = vmatprep.subr.mxu0 0.0
        %1343 = vmatpush1.msra.mxu0 0.0
        %1344 = vmatprep.subr.mxu0 0.0
        %1345 = vmatpush1.msra.mxu0 0.0
        %1346 = vmatprep.subr.mxu0 0.0
        %1347 = vmatpush1.msra.mxu0 0.0
        %1348 = vmatprep.subr.mxu0 0.0
        %1349 = vmatpush1.msra.mxu0 0.0
        %1350 = vmatprep.subr.mxu0 0.0
        %1351 = vmatpush1.msra.mxu0 0.0
        %1352 = vmatprep.subr.mxu0 0.0
        %1353 = vmatpush1.msra.mxu0 0.0
        %1354 = vmatprep.mubr.f32.mxu0 0.0
        %1355 = vmatmul.mubr.f32.gmra.mrb[0].mxu0 %v1285
        %v1356 = vpop.f32.mrb[0].mxu0
        %v1357 = vadd.f32 0.0, %v1356
        %v1358 = vpop.f32.mrb[0].mxu0
        %1359 = vmatprep.mubr.f32.mxu0 0.0
        %1360 = vmatmul.mubr.f32.gmra.mrb[0].mxu0 %v1288
        %v1361 = vpop.f32.mrb[0].mxu0
        %v1362 = vadd.f32 0.0, %v1361
        %v1363 = vpop.f32.mrb[0].mxu0
        %1364 = vdwg.mxu0
        %s1365 = scalar_lea.vmem %s363, 80 [#allocation8]
        %1366 = vst.msk [vmem:[%s1365] sm:$0xff] %vm550, %v1357
        %1367 = vst.msk [vmem:[%s1365 + $0x8] sm:$0xff] %vm550, %v1362
        %v1368 = vld [vmem:[%s1042] sm:$0xff]
        %v1369 = vld [vmem:[%s714] sm:$0xff]
        %v1370 = vld [vmem:[%s327] sm:$0xff]
        %v1371 = vsub.f32 %v1369, %v1368
        %v1372 = vmul.f32 %v1371, 0.25
        %v1373 = vadd.f32 %v1368, %v1372
        %v1374 = vsub.f32 %v1370, %v1368
        %v1375 = vmul.f32 %v1374, 0.25
        %v1376 = vadd.f32 %v1368, %v1375
        %1377 = vmatprep.subr.mxu0 0.0
        %1378 = vmatpush1.msra.mxu0 %v1373
        %1379 = vmatprep.subr.mxu0 0.0
        %1380 = vmatpush1.msra.mxu0 0.0
        %1381 = vmatprep.subr.mxu0 0.0
        %1382 = vmatpush1.msra.mxu0 0.0
        %1383 = vmatprep.subr.mxu0 0.0
        %1384 = vmatpush1.msra.mxu0 0.0
        %1385 = vmatprep.subr.mxu0 0.0
        %1386 = vmatpush1.msra.mxu0 0.0
        %1387 = vmatprep.subr.mxu0 0.0
        %1388 = vmatpush1.msra.mxu0 0.0
        %1389 = vmatprep.subr.mxu0 0.0
        %1390 = vmatpush1.msra.mxu0 0.0
        %1391 = vmatprep.subr.mxu0 0.0
        %1392 = vmatpush1.msra.mxu0 0.0
        %1393 = vmatprep.subr.mxu0 0.0
        %1394 = vmatpush1.msra.mxu0 0.0
        %1395 = vmatprep.subr.mxu0 0.0
        %1396 = vmatpush1.msra.mxu0 0.0
        %1397 = vmatprep.subr.mxu0 0.0
        %1398 = vmatpush1.msra.mxu0 0.0
        %1399 = vmatprep.subr.mxu0 0.0
        %1400 = vmatpush1.msra.mxu0 0.0
        %1401 = vmatprep.subr.mxu0 0.0
        %1402 = vmatpush1.msra.mxu0 0.0
        %1403 = vmatprep.subr.mxu0 0.0
        %1404 = vmatpush1.msra.mxu0 0.0
        %1405 = vmatprep.subr.mxu0 0.0
        %1406 = vmatpush1.msra.mxu0 0.0
        %1407 = vmatprep.subr.mxu0 0.0
        %1408 = vmatpush1.msra.mxu0 0.0
        %1409 = vmatprep.subr.mxu0 0.0
        %1410 = vmatpush1.msra.mxu0 0.0
        %1411 = vmatprep.subr.mxu0 0.0
        %1412 = vmatpush1.msra.mxu0 0.0
        %1413 = vmatprep.subr.mxu0 0.0
        %1414 = vmatpush1.msra.mxu0 0.0
        %1415 = vmatprep.subr.mxu0 0.0
        %1416 = vmatpush1.msra.mxu0 0.0
        %1417 = vmatprep.subr.mxu0 0.0
        %1418 = vmatpush1.msra.mxu0 0.0
        %1419 = vmatprep.subr.mxu0 0.0
        %1420 = vmatpush1.msra.mxu0 0.0
        %1421 = vmatprep.subr.mxu0 0.0
        %1422 = vmatpush1.msra.mxu0 0.0
        %1423 = vmatprep.subr.mxu0 0.0
        %1424 = vmatpush1.msra.mxu0 0.0
        %1425 = vmatprep.subr.mxu0 0.0
        %1426 = vmatpush1.msra.mxu0 0.0
        %1427 = vmatprep.subr.mxu0 0.0
        %1428 = vmatpush1.msra.mxu0 0.0
        %1429 = vmatprep.subr.mxu0 0.0
        %1430 = vmatpush1.msra.mxu0 0.0
        %1431 = vmatprep.subr.mxu0 0.0
        %1432 = vmatpush1.msra.mxu0 0.0
        %1433 = vmatprep.subr.mxu0 0.0
        %1434 = vmatpush1.msra.mxu0 0.0
        %1435 = vmatprep.subr.mxu0 0.0
        %1436 = vmatpush1.msra.mxu0 0.0
        %1437 = vmatprep.subr.mxu0 0.0
        %1438 = vmatpush1.msra.mxu0 0.0
        %1439 = vmatprep.subr.mxu0 0.0
        %1440 = vmatpush1.msra.mxu0 0.0
        %1441 = vmatprep.mubr.f32.mxu0 0.0
        %1442 = vmatmul.mubr.f32.gmra.mrb[0].mxu0 %v389
        %v1443 = vpop.f32.mrb[0].mxu0
        %v1444 = vadd.f32 0.0, %v1443
        %v1445 = vpop.f32.mrb[0].mxu0
        %1446 = vmatprep.mubr.f32.mxu0 0.0
        %1447 = vmatmul.mubr.f32.gmra.mrb[0].mxu0 %v392
        %v1448 = vpop.f32.mrb[0].mxu0
        %v1449 = vadd.f32 0.0, %v1448
        %v1450 = vpop.f32.mrb[0].mxu0
        %1451 = vdwg.mxu0
        %v1453 = vsel %vm387, %v1444, 0
        %v1456 = vsel %vm387, %v1449, 0
        %1458 = vmatprep.subr.mxu0 0.0
        %1459 = vmatpush1.msra.mxu0 %v376
        %1460 = vmatprep.subr.mxu0 0.0
        %1461 = vmatpush1.msra.mxu0 0.0
        %1462 = vmatprep.subr.mxu0 0.0
        %1463 = vmatpush1.msra.mxu0 0.0
        %1464 = vmatprep.subr.mxu0 0.0
        %1465 = vmatpush1.msra.mxu0 0.0
        %1466 = vmatprep.subr.mxu0 0.0
        %1467 = vmatpush1.msra.mxu0 0.0
        %1468 = vmatprep.subr.mxu0 0.0
        %1469 = vmatpush1.msra.mxu0 0.0
        %1470 = vmatprep.subr.mxu0 0.0
        %1471 = vmatpush1.msra.mxu0 0.0
        %1472 = vmatprep.subr.mxu0 0.0
        %1473 = vmatpush1.msra.mxu0 0.0
        %1474 = vmatprep.subr.mxu0 0.0
        %1475 = vmatpush1.msra.mxu0 0.0
        %1476 = vmatprep.subr.mxu0 0.0
        %1477 = vmatpush1.msra.mxu0 0.0
        %1478 = vmatprep.subr.mxu0 0.0
        %1479 = vmatpush1.msra.mxu0 0.0
        %1480 = vmatprep.subr.mxu0 0.0
        %1481 = vmatpush1.msra.mxu0 0.0
        %1482 = vmatprep.subr.mxu0 0.0
        %1483 = vmatpush1.msra.mxu0 0.0
        %1484 = vmatprep.subr.mxu0 0.0
        %1485 = vmatpush1.msra.mxu0 0.0
        %1486 = vmatprep.subr.mxu0 0.0
        %1487 = vmatpush1.msra.mxu0 0.0
        %1488 = vmatprep.subr.mxu0 0.0
        %1489 = vmatpush1.msra.mxu0 0.0
        %1490 = vmatprep.subr.mxu0 0.0
        %1491 = vmatpush1.msra.mxu0 0.0
        %1492 = vmatprep.subr.mxu0 0.0
        %1493 = vmatpush1.msra.mxu0 0.0
        %1494 = vmatprep.subr.mxu0 0.0
        %1495 = vmatpush1.msra.mxu0 0.0
        %1496 = vmatprep.subr.mxu0 0.0
        %1497 = vmatpush1.msra.mxu0 0.0
        %1498 = vmatprep.subr.mxu0 0.0
        %1499 = vmatpush1.msra.mxu0 0.0
        %1500 = vmatprep.subr.mxu0 0.0
        %1501 = vmatpush1.msra.mxu0 0.0
        %1502 = vmatprep.subr.mxu0 0.0
        %1503 = vmatpush1.msra.mxu0 0.0
        %1504 = vmatprep.subr.mxu0 0.0
        %1505 = vmatpush1.msra.mxu0 0.0
        %1506 = vmatprep.subr.mxu0 0.0
        %1507 = vmatpush1.msra.mxu0 0.0
        %1508 = vmatprep.subr.mxu0 0.0
        %1509 = vmatpush1.msra.mxu0 0.0
        %1510 = vmatprep.subr.mxu0 0.0
        %1511 = vmatpush1.msra.mxu0 0.0
        %1512 = vmatprep.subr.mxu0 0.0
        %1513 = vmatpush1.msra.mxu0 0.0
        %1514 = vmatprep.subr.mxu0 0.0
        %1515 = vmatpush1.msra.mxu0 0.0
        %1516 = vmatprep.subr.mxu0 0.0
        %1517 = vmatpush1.msra.mxu0 0.0
        %1518 = vmatprep.subr.mxu0 0.0
        %1519 = vmatpush1.msra.mxu0 0.0
        %1520 = vmatprep.subr.mxu0 0.0
        %1521 = vmatpush1.msra.mxu0 0.0
        %1522 = vmatprep.mubr.f32.mxu0 0.0
        %1523 = vmatmul.mubr.f32.gmra.mrb[0].mxu0 %v1453
        %v1524 = vpop.f32.mrb[0].mxu0
        %v1525 = vadd.f32 0.0, %v1524
        %v1526 = vpop.f32.mrb[0].mxu0
        %1527 = vmatprep.mubr.f32.mxu0 0.0
        %1528 = vmatmul.mubr.f32.gmra.mrb[0].mxu0 %v1456
        %v1529 = vpop.f32.mrb[0].mxu0
        %v1530 = vadd.f32 0.0, %v1529
        %v1531 = vpop.f32.mrb[0].mxu0
        %1532 = vdwg.mxu0
        %s1533 = scalar_lea.vmem %s363, 96 [#allocation8]
        %1534 = vst.msk [vmem:[%s1533] sm:$0xff] %vm550, %v1525
        %1535 = vst.msk [vmem:[%s1533 + $0x8] sm:$0xff] %vm550, %v1530
        %1536 = vmatprep.subr.mxu0 0.0
        %1537 = vmatpush1.msra.mxu0 %v1376
        %1538 = vmatprep.subr.mxu0 0.0
        %1539 = vmatpush1.msra.mxu0 0.0
        %1540 = vmatprep.subr.mxu0 0.0
        %1541 = vmatpush1.msra.mxu0 0.0
        %1542 = vmatprep.subr.mxu0 0.0
        %1543 = vmatpush1.msra.mxu0 0.0
        %1544 = vmatprep.subr.mxu0 0.0
        %1545 = vmatpush1.msra.mxu0 0.0
        %1546 = vmatprep.subr.mxu0 0.0
        %1547 = vmatpush1.msra.mxu0 0.0
        %1548 = vmatprep.subr.mxu0 0.0
        %1549 = vmatpush1.msra.mxu0 0.0
        %1550 = vmatprep.subr.mxu0 0.0
        %1551 = vmatpush1.msra.mxu0 0.0
        %1552 = vmatprep.subr.mxu0 0.0
        %1553 = vmatpush1.msra.mxu0 0.0
        %1554 = vmatprep.subr.mxu0 0.0
        %1555 = vmatpush1.msra.mxu0 0.0
        %1556 = vmatprep.subr.mxu0 0.0
        %1557 = vmatpush1.msra.mxu0 0.0
        %1558 = vmatprep.subr.mxu0 0.0
        %1559 = vmatpush1.msra.mxu0 0.0
        %1560 = vmatprep.subr.mxu0 0.0
        %1561 = vmatpush1.msra.mxu0 0.0
        %1562 = vmatprep.subr.mxu0 0.0
        %1563 = vmatpush1.msra.mxu0 0.0
        %1564 = vmatprep.subr.mxu0 0.0
        %1565 = vmatpush1.msra.mxu0 0.0
        %1566 = vmatprep.subr.mxu0 0.0
        %1567 = vmatpush1.msra.mxu0 0.0
        %1568 = vmatprep.subr.mxu0 0.0
        %1569 = vmatpush1.msra.mxu0 0.0
        %1570 = vmatprep.subr.mxu0 0.0
        %1571 = vmatpush1.msra.mxu0 0.0
        %1572 = vmatprep.subr.mxu0 0.0
        %1573 = vmatpush1.msra.mxu0 0.0
        %1574 = vmatprep.subr.mxu0 0.0
        %1575 = vmatpush1.msra.mxu0 0.0
        %1576 = vmatprep.subr.mxu0 0.0
        %1577 = vmatpush1.msra.mxu0 0.0
        %1578 = vmatprep.subr.mxu0 0.0
        %1579 = vmatpush1.msra.mxu0 0.0
        %1580 = vmatprep.subr.mxu0 0.0
        %1581 = vmatpush1.msra.mxu0 0.0
        %1582 = vmatprep.subr.mxu0 0.0
        %1583 = vmatpush1.msra.mxu0 0.0
        %1584 = vmatprep.subr.mxu0 0.0
        %1585 = vmatpush1.msra.mxu0 0.0
        %1586 = vmatprep.subr.mxu0 0.0
        %1587 = vmatpush1.msra.mxu0 0.0
        %1588 = vmatprep.subr.mxu0 0.0
        %1589 = vmatpush1.msra.mxu0 0.0
        %1590 = vmatprep.subr.mxu0 0.0
        %1591 = vmatpush1.msra.mxu0 0.0
        %1592 = vmatprep.subr.mxu0 0.0
        %1593 = vmatpush1.msra.mxu0 0.0
        %1594 = vmatprep.subr.mxu0 0.0
        %1595 = vmatpush1.msra.mxu0 0.0
        %1596 = vmatprep.subr.mxu0 0.0
        %1597 = vmatpush1.msra.mxu0 0.0
        %1598 = vmatprep.subr.mxu0 0.0
        %1599 = vmatpush1.msra.mxu0 0.0
        %1600 = vmatprep.mubr.f32.mxu0 0.0
        %1601 = vmatmul.mubr.f32.gmra.mrb[0].mxu0 %v389
        %v1602 = vpop.f32.mrb[0].mxu0
        %v1603 = vadd.f32 0.0, %v1602
        %v1604 = vpop.f32.mrb[0].mxu0
        %1605 = vmatprep.mubr.f32.mxu0 0.0
        %1606 = vmatmul.mubr.f32.gmra.mrb[0].mxu0 %v392
        %v1607 = vpop.f32.mrb[0].mxu0
        %v1608 = vadd.f32 0.0, %v1607
        %v1609 = vpop.f32.mrb[0].mxu0
        %1610 = vdwg.mxu0
        %v1612 = vsel %vm387, %v1603, 0
        %v1615 = vsel %vm387, %v1608, 0
        %1617 = vmatprep.subr.mxu0 0.0
        %1618 = vmatpush1.msra.mxu0 %v376
        %1619 = vmatprep.subr.mxu0 0.0
        %1620 = vmatpush1.msra.mxu0 0.0
        %1621 = vmatprep.subr.mxu0 0.0
        %1622 = vmatpush1.msra.mxu0 0.0
        %1623 = vmatprep.subr.mxu0 0.0
        %1624 = vmatpush1.msra.mxu0 0.0
        %1625 = vmatprep.subr.mxu0 0.0
        %1626 = vmatpush1.msra.mxu0 0.0
        %1627 = vmatprep.subr.mxu0 0.0
        %1628 = vmatpush1.msra.mxu0 0.0
        %1629 = vmatprep.subr.mxu0 0.0
        %1630 = vmatpush1.msra.mxu0 0.0
        %1631 = vmatprep.subr.mxu0 0.0
        %1632 = vmatpush1.msra.mxu0 0.0
        %1633 = vmatprep.subr.mxu0 0.0
        %1634 = vmatpush1.msra.mxu0 0.0
        %1635 = vmatprep.subr.mxu0 0.0
        %1636 = vmatpush1.msra.mxu0 0.0
        %1637 = vmatprep.subr.mxu0 0.0
        %1638 = vmatpush1.msra.mxu0 0.0
        %1639 = vmatprep.subr.mxu0 0.0
        %1640 = vmatpush1.msra.mxu0 0.0
        %1641 = vmatprep.subr.mxu0 0.0
        %1642 = vmatpush1.msra.mxu0 0.0
        %1643 = vmatprep.subr.mxu0 0.0
        %1644 = vmatpush1.msra.mxu0 0.0
        %1645 = vmatprep.subr.mxu0 0.0
        %1646 = vmatpush1.msra.mxu0 0.0
        %1647 = vmatprep.subr.mxu0 0.0
        %1648 = vmatpush1.msra.mxu0 0.0
        %1649 = vmatprep.subr.mxu0 0.0
        %1650 = vmatpush1.msra.mxu0 0.0
        %1651 = vmatprep.subr.mxu0 0.0
        %1652 = vmatpush1.msra.mxu0 0.0
        %1653 = vmatprep.subr.mxu0 0.0
        %1654 = vmatpush1.msra.mxu0 0.0
        %1655 = vmatprep.subr.mxu0 0.0
        %1656 = vmatpush1.msra.mxu0 0.0
        %1657 = vmatprep.subr.mxu0 0.0
        %1658 = vmatpush1.msra.mxu0 0.0
        %1659 = vmatprep.subr.mxu0 0.0
        %1660 = vmatpush1.msra.mxu0 0.0
        %1661 = vmatprep.subr.mxu0 0.0
        %1662 = vmatpush1.msra.mxu0 0.0
        %1663 = vmatprep.subr.mxu0 0.0
        %1664 = vmatpush1.msra.mxu0 0.0
        %1665 = vmatprep.subr.mxu0 0.0
        %1666 = vmatpush1.msra.mxu0 0.0
        %1667 = vmatprep.subr.mxu0 0.0
        %1668 = vmatpush1.msra.mxu0 0.0
        %1669 = vmatprep.subr.mxu0 0.0
        %1670 = vmatpush1.msra.mxu0 0.0
        %1671 = vmatprep.subr.mxu0 0.0
        %1672 = vmatpush1.msra.mxu0 0.0
        %1673 = vmatprep.subr.mxu0 0.0
        %1674 = vmatpush1.msra.mxu0 0.0
        %1675 = vmatprep.subr.mxu0 0.0
        %1676 = vmatpush1.msra.mxu0 0.0
        %1677 = vmatprep.subr.mxu0 0.0
        %1678 = vmatpush1.msra.mxu0 0.0
        %1679 = vmatprep.subr.mxu0 0.0
        %1680 = vmatpush1.msra.mxu0 0.0
        %1681 = vmatprep.mubr.f32.mxu0 0.0
        %1682 = vmatmul.mubr.f32.gmra.mrb[0].mxu0 %v1612
        %v1683 = vpop.f32.mrb[0].mxu0
        %v1684 = vadd.f32 0.0, %v1683
        %v1685 = vpop.f32.mrb[0].mxu0
        %1686 = vmatprep.mubr.f32.mxu0 0.0
        %1687 = vmatmul.mubr.f32.gmra.mrb[0].mxu0 %v1615
        %v1688 = vpop.f32.mrb[0].mxu0
        %v1689 = vadd.f32 0.0, %v1688
        %v1690 = vpop.f32.mrb[0].mxu0
        %1691 = vdwg.mxu0
        %s1692 = scalar_lea.vmem %s363, 112 [#allocation8]
        %1693 = vst.msk [vmem:[%s1692] sm:$0xff] %vm550, %v1684
        %1694 = vst.msk [vmem:[%s1692 + $0x8] sm:$0xff] %vm550, %v1689
        %s1695 = sand.u32 %s189, 1
        %s1696 = scalar_lea.sflag [#allocation4], %s1695
        %s1697 = sand.u32 %s189, 1
        %s1698 = smul.addr %s1697, 128
        %s1699 = scalar_lea.vmem [#allocation8], %s1698
        // Predicated region
        $region53: #{tpu_custom_call.1} parent=39 // pred_check
          %p1700 = pneg %p199
        $region54: #{tpu_custom_call.1} parent=39 // pred_check_branch
          %1702 = sbr.rel (%p1700) target = $region56
        $region55: #{tpu_custom_call.1} parent=39 // pred_region
          %s1703 = smul.u32 8, %s30
          %s1705 = ssub.s32 2048, 2048
          %1706 = vsyncadd %s1696, %s1705
          %s1707 = smul.addr %s1703, 2
          %s1708 = smul.addr %s29, 16
          %s1709 = sadd.s32 %s1707, %s1708
          %s1710 = smul.addr %s1709, 128
          %s1711 = scalar_lea.hbm %s5, %s1710
          %s1712 = sshll.u32 %s1699, 4
          %s1713 = int_to_ptr.vmem [resolvable:$true] %s1712
          %1718 = dma.vmem_to_hbm [thread:$0]  %s1713, 2048, %s1711, %s1696, 128, 128, 8
        $region56: #{tpu_custom_call.1} parent=39 // pred_fallthru
          _
      $region40: #{tpu_custom_call.1} parent=5 // pred_fallthru
        _
      %p1719 = scmp.le.s32.totalorder 2, %s20
      // Predicated region
      $region57: #{tpu_custom_call.1} parent=5 // pred_check
        %p1720 = pneg %p1719
      $region58: #{tpu_custom_call.1} parent=5 // pred_check_branch
        %1722 = sbr.rel (%p1720) target = $region60
      $region59: #{tpu_custom_call.1} parent=5 // pred_region
        %s1723 = ssub.s32 %s20, 2
        // Predicated region
        $region61: #{tpu_custom_call.1} parent=59 // pred_check
          %p1724 = pneg %p205
        $region62: #{tpu_custom_call.1} parent=59 // pred_check_branch
          %1726 = sbr.rel (%p1724) target = $region64
        $region63: #{tpu_custom_call.1} parent=59 // pred_region
          %s1727 = sand.u32 %s190, 1
          %s1728 = scalar_lea.sflag [#allocation4], %s1727
          %s1729 = sand.u32 %s190, 1
          %s1730 = smul.addr %s1729, 128
          %s1731 = scalar_lea.vmem [#allocation8], %s1730
          %1732 = dma.done %s1728, 2048
        $region64: #{tpu_custom_call.1} parent=59 // pred_fallthru
          _
      $region60: #{tpu_custom_call.1} parent=5 // pred_fallthru
        _
    $region6: #{tpu_custom_call.1} parent=1 // loop_footer
      %s24 = sadd.s32 1, %s20
    $region7: #{tpu_custom_call.1} parent=1 // loop_footer_branch
      %19 = sbr.rel target = $region3
    $region8: #{tpu_custom_call.1} parent=1 // loop_exit
      _
    %1733 = vsyncpa [#allocation3], 1
    %s1734 = scalar_lea.sflag [#allocation3], 1
    %1735 = vsyncpa %s1734, 1
    %1736 = vsyncpa [#allocation6], 1
    %s1737 = scalar_lea.sflag [#allocation6], 1
    %1738 = vsyncpa %s1737, 1
    %1739 = vsyncpa [#allocation4], 1
    %s1740 = scalar_lea.sflag [#allocation4], 1
    %1741 = vsyncpa %s1740, 1

</llo_original>
